<compile_context>
chip_gen: v7x
topology: tpu7x:2x2x1
jax: 0.10.0
libtpu: 0.0.40
codegen_flags: <defaults>
</compile_context>

<pallas_src>
import functools
import math

import jax
import jax.numpy as jnp
from jax import lax
from jax.experimental import pallas as pl
from jax.experimental.pallas import tpu as pltpu

_MIB = 1024 * 1024


# --------------------------------------------------------------------------- #
# Hardware-aware knobs
# --------------------------------------------------------------------------- #
def _vmem_capacity_bytes():
    """Physical VMEM per TensorCore, or None if the query is unavailable."""
    try:
        return int(pltpu.get_tpu_info().vmem_capacity_bytes)
    except Exception:
        return None


def _vmem_limit_bytes(cap):
    """Generation-aware scoped-VMEM request (headroom on v7x, more on v5e/v6e)."""
    if cap is None:
        return 64 * _MIB                        # safe on every generation
    if cap <= 64 * _MIB:                        # v7x-class: 64 MiB physical / TC
        return max(cap - 12 * _MIB, 32 * _MIB)
    return min(cap - 16 * _MIB, 112 * _MIB)     # v5e / v6e: 128 MiB physical


def _pick_q_tile(seq, cap):
    """Largest divisor of seq <= 256 (v5e/v6e) or 128 (v7x / unknown)."""
    pref = 256 if (cap is not None and cap > 64 * _MIB) else 128
    tile = min(pref, seq)
    while seq % tile:
        tile -= 1
    return tile


# --------------------------------------------------------------------------- #
# Head layout helpers (fast = single reshape+transpose, slow = proven slices)
# --------------------------------------------------------------------------- #
def _split_heads(x2d, n_heads, head_dim, fast):
    """(rows, n_heads*head_dim) -> (n_heads, rows, head_dim)."""
    rows = x2d.shape[0]
    if fast:
        return jnp.transpose(x2d.reshape(rows, n_heads, head_dim), (1, 0, 2))
    return jnp.stack(
        [x2d[:, h * head_dim:(h + 1) * head_dim] for h in range(n_heads)],
        axis=0)


def _merge_heads(x3d, fast):
    """(n_heads, rows, head_dim) -> (rows, n_heads*head_dim)."""
    n, rows, d = x3d.shape
    if fast:
        return jnp.transpose(x3d, (1, 0, 2)).reshape(rows, n * d)
    return jnp.concatenate([x3d[h] for h in range(n)], axis=-1)


# --------------------------------------------------------------------------- #
# Phase 1: LayerNorm + K/V projection (per batch element, per sequence tile)
# --------------------------------------------------------------------------- #
def _ln_kv_kernel(x_ref, gamma_ref, beta_ref, wkv_ref, xn_ref, k_ref, v_ref, *,
                  hidden, eps):
    f32, bf16 = jnp.float32, jnp.bfloat16
    x = x_ref[0].astype(f32)                                    # (tile, H)
    # Two-pass LayerNorm statistics (variance cannot go negative).
    mu = jnp.mean(x, axis=-1, keepdims=True)
    xc = x - mu
    var = jnp.mean(xc * xc, axis=-1, keepdims=True)
    xn = xc * lax.rsqrt(var + eps)
    xn = xn * gamma_ref[...].astype(f32) + beta_ref[...].astype(f32)
    xn_bf = xn.astype(bf16)
    xn_ref[0] = xn_bf
    # (tile, H) @ (H, 2H) K/V projection; two contiguous lane-aligned stores.
    kv = jnp.dot(xn_bf, wkv_ref[...], preferred_element_type=f32)
    k_ref[0] = kv[:, :hidden].astype(bf16)
    v_ref[0] = kv[:, hidden:].astype(bf16)


# --------------------------------------------------------------------------- #
# Phase 2: per query tile — Q/FF projections, attention, GLU MLP, residual
# --------------------------------------------------------------------------- #
def _attn_mlp_kernel(x_ref, xn_ref, k_ref, v_ref, mask_ref,
                     wq_ref, wff_ref, wo_attn_ref, wo_mlp_ref, out_ref, *,
                     n_heads, head_dim, intermediate, ff_chunk, fast):
    f32, bf16 = jnp.float32, jnp.bfloat16
    x_t = x_ref[0].astype(f32)                                  # (tq, H) residual
    xn_t = xn_ref[0]                                            # (tq, H) bf16

    # ---- attention ----
    scale = 1.0 / math.sqrt(head_dim)
    q = jnp.dot(xn_t, wq_ref[...], preferred_element_type=f32)  # (tq, H)
    q = (q * scale).astype(bf16)                                # fold scale into q
    q3 = _split_heads(q, n_heads, head_dim, fast)               # (nh, tq, hd)
    k3 = _split_heads(k_ref[0], n_heads, head_dim, fast)        # (nh, S, hd)
    v3 = _split_heads(v_ref[0], n_heads, head_dim, fast)        # (nh, S, hd)

    s = jnp.einsum("nqd,nkd->nqk", q3, k3,
                   preferred_element_type=f32)                  # (nh, tq, S) f32
    s = s + mask_ref[0]                                         # additive padding bias
    m = jnp.max(s, axis=-1, keepdims=True)
    p = jnp.exp(s - m)                                          # f32 softmax
    denom = jnp.sum(p, axis=-1, keepdims=True)
    p = (p * pl.reciprocal(denom, approx=True)).astype(bf16)    # EUP reciprocal
    ctx3 = jnp.einsum("nqk,nkd->nqd", p, v3,
                      preferred_element_type=f32)               # (nh, tq, hd)
    ctx = _merge_heads(ctx3, fast).astype(bf16)                 # (tq, H)
    attn_out = jnp.dot(ctx, wo_attn_ref[...], preferred_element_type=f32)

    # ---- parallel GLU MLP, chunked over the intermediate dimension ----
    mlp_out = jnp.zeros_like(attn_out)
    for c0 in range(0, intermediate, ff_chunk):
        w_in = wff_ref[:, c0:c0 + ff_chunk]                     # (H, chunk)
        w_gt = wff_ref[:, intermediate + c0:intermediate + c0 + ff_chunk]
        inp = jnp.dot(xn_t, w_in, preferred_element_type=f32)   # (tq, chunk)
        gate = jnp.dot(xn_t, w_gt, preferred_element_type=f32)
        glu = (jax.nn.gelu(inp, approximate=False) * gate).astype(bf16)
        mlp_out = mlp_out + jnp.dot(glu, wo_mlp_ref[c0:c0 + ff_chunk, :],
                                    preferred_element_type=f32)

    out_ref[0] = (x_t + attn_out + mlp_out).astype(out_ref.dtype)


# --------------------------------------------------------------------------- #
# Wrapper
# --------------------------------------------------------------------------- #
def _forward(x, mask_bias, gamma, beta, w_q, w_kv, w_ff, w_attn_o, w_mlp_o, *,
             n_heads, intermediate, eps, q_tile, vmem_limit, fast):
    B, S, H = x.shape
    head_dim = H // n_heads
    n_tiles = S // q_tile
    bf16 = jnp.bfloat16

    # Weights have constant index maps -> DMA'd once; single-buffer them on the
    # fast path so they do not occupy 2x VMEM.
    def wspec(shape):
        idx = lambda b, t: (0,) * len(shape)
        if fast:
            return pl.BlockSpec(shape, idx,
                                pipeline_mode=pl.Buffered(buffer_count=1))
        return pl.BlockSpec(shape, idx)

    cparams = pltpu.CompilerParams(
        dimension_semantics=("parallel", "parallel"),    # megacore on both axes
        vmem_limit_bytes=vmem_limit)

    # ---- phase 1: LayerNorm + K/V projection ----
    xn, k, v = pl.pallas_call(
        functools.partial(_ln_kv_kernel, hidden=H, eps=eps),
        out_shape=(jax.ShapeDtypeStruct((B, S, H), bf16),       # xn
                   jax.ShapeDtypeStruct((B, S, H), bf16),       # K
                   jax.ShapeDtypeStruct((B, S, H), bf16)),      # V
        grid=(B, n_tiles),
        in_specs=[
            pl.BlockSpec((1, q_tile, H), lambda b, t: (b, t, 0)),   # x
            wspec((1, H)),                                          # gamma
            wspec((1, H)),                                          # beta
            wspec((H, 2 * H)),                                      # W_kv
        ],
        out_specs=(pl.BlockSpec((1, q_tile, H), lambda b, t: (b, t, 0)),
                   pl.BlockSpec((1, q_tile, H), lambda b, t: (b, t, 0)),
                   pl.BlockSpec((1, q_tile, H), lambda b, t: (b, t, 0))),
        compiler_params=cparams,
        cost_estimate=pl.CostEstimate(
            flops=4 * B * S * H * H,
            transcendentals=B * S,
            bytes_accessed=10 * B * S * H + 4 * H * H),
    )(x, gamma, beta, w_kv)

    # ---- phase 2: Q/FF projections, attention, GLU MLP ----
    ff_chunk = min(intermediate, 1024)
    while intermediate % ff_chunk:
        ff_chunk -= 1

    kernel = functools.partial(
        _attn_mlp_kernel, n_heads=n_heads, head_dim=head_dim,
        intermediate=intermediate, ff_chunk=ff_chunk, fast=fast)

    weight_bytes = 2 * (2 * H * H + 3 * H * intermediate)
    cost = pl.CostEstimate(
        flops=2 * B * S * H * (2 * H + 3 * intermediate) + 4 * B * S * S * H,
        transcendentals=B * n_heads * S * S + B * S * intermediate,
        bytes_accessed=weight_bytes + 8 * B * S * H + 6 * B * S * H + 4 * B * S)

    out = pl.pallas_call(
        kernel,
        out_shape=jax.ShapeDtypeStruct((B, S, H), x.dtype),
        grid=(B, n_tiles),
        in_specs=[
            pl.BlockSpec((1, q_tile, H), lambda b, t: (b, t, 0)),   # x (residual)
            pl.BlockSpec((1, q_tile, H), lambda b, t: (b, t, 0)),   # xn tile
            pl.BlockSpec((1, S, H), lambda b, t: (b, 0, 0)),        # K (per batch)
            pl.BlockSpec((1, S, H), lambda b, t: (b, 0, 0)),        # V (per batch)
            pl.BlockSpec((1, 1, S), lambda b, t: (b, 0, 0)),        # mask bias
            wspec((H, H)),                                          # W_q
            wspec((H, 2 * intermediate)),                           # W_ff
            wspec((H, H)),                                          # attn Wo
            wspec((intermediate, H)),                               # mlp Wo
        ],
        out_specs=pl.BlockSpec((1, q_tile, H), lambda b, t: (b, t, 0)),
        compiler_params=cparams,
        cost_estimate=cost,
    )(x, xn, k, v, mask_bias, w_q, w_ff, w_attn_o, w_mlp_o)
    return out


def flexbert_parallel_prenorm_layer(x, attn_mask, params, *, n_heads,
                                    intermediate, eps=1e-12, q_tile=None):
    B, S, H = x.shape
    assert H % n_heads == 0
    cap = _vmem_capacity_bytes()
    vmem_limit = _vmem_limit_bytes(cap)
    if q_tile is None:
        q_tile = _pick_q_tile(S, cap)
    assert S % q_tile == 0, "sequence length must be divisible by the query tile"

    # (B, S) 1/0 padding mask -> f32 additive bias (B, 1, S).
    if attn_mask is None:
        mask_bias = jnp.zeros((B, 1, S), jnp.float32)
    else:
        mask_bias = jnp.where(attn_mask[:, None, :].astype(bool), 0.0,
                              -1e9).astype(jnp.float32)

    # Split the fused Wqkvff weight on the host; matmul weights stored bf16.
    wqkvff = params["Wqkvff"]
    w_q = wqkvff[:, :H].astype(jnp.bfloat16)                    # (H, H)
    w_kv = wqkvff[:, H:3 * H].astype(jnp.bfloat16)              # (H, 2H)
    w_ff = wqkvff[:, 3 * H:].astype(jnp.bfloat16)               # (H, 2I)
    w_attn_o = params["W_attn_o"].astype(jnp.bfloat16)          # (H, H)
    w_mlp_o = params["W_mlp_o"].astype(jnp.bfloat16)            # (I, H)
    gamma = params["norm_weight"].reshape(1, H).astype(jnp.float32)
    beta = params["norm_bias"].reshape(1, H).astype(jnp.float32)

    run = functools.partial(
        _forward, x, mask_bias, gamma, beta, w_q, w_kv, w_ff, w_attn_o,
        w_mlp_o, n_heads=n_heads, intermediate=intermediate, eps=eps,
        q_tile=q_tile, vmem_limit=vmem_limit)
    try:
        return jax.block_until_ready(run(fast=True))
    except Exception:
        # Fallback for toolchains where pl.Buffered(1) on the top-level
        # pallas_call or the in-kernel reshape/transpose head layout is not
        # supported: identical math, default buffering, slice-based head split.
        return jax.block_until_ready(run(fast=False))


# --------------------------------------------------------------------------- #
# Pure-JAX reference (uses the same bf16-quantized weights as the kernels)
# --------------------------------------------------------------------------- #
def reference(x, attn_mask, params, *, n_heads, intermediate, eps=1e-12):
    B, S, H = x.shape
    hd = H // n_heads
    f32 = jnp.float32
    wqkvff = params["Wqkvff"].astype(jnp.bfloat16).astype(f32)
    w_attn_o = params["W_attn_o"].astype(jnp.bfloat16).astype(f32)
    w_mlp_o = params["W_mlp_o"].astype(jnp.bfloat16).astype(f32)
    g = params["norm_weight"][None, None, :]
    b = params["norm_bias"][None, None, :]
    mu = jnp.mean(x, -1, keepdims=True)
    var = jnp.mean((x - mu) ** 2, -1, keepdims=True)
    xn = (x - mu) * lax.rsqrt(var + eps) * g + b
    xn = xn.astype(jnp.bfloat16).astype(f32)             # bf16 MXU boundary
    y = xn @ wqkvff
    qkv, ff = y[..., :3 * H], y[..., 3 * H:]
    q = qkv[..., :H].reshape(B, S, n_heads, hd)
    k = qkv[..., H:2 * H].reshape(B, S, n_heads, hd)
    v = qkv[..., 2 * H:].reshape(B, S, n_heads, hd)
    s = jnp.einsum("bqhd,bkhd->bhqk", q, k) / math.sqrt(hd)
    bias = jnp.where(attn_mask[:, None, None, :].astype(bool), 0.0, -1e9)
    p = jax.nn.softmax(s + bias, axis=-1)
    ctx = jnp.einsum("bhqk,bkhd->bqhd", p, v).reshape(B, S, H)
    attn_out = ctx @ w_attn_o
    inp, gate = ff[..., :intermediate], ff[..., intermediate:]
    mlp_out = (jax.nn.gelu(inp, approximate=False) * gate) @ w_mlp_o
    return x + attn_out + mlp_out


if __name__ == "__main__":
    B, S, H = 2, 8, 32
    n_heads, intermediate = 4, 64
    attn_size, mlp_size = 3 * H, 2 * intermediate

    key = jax.random.PRNGKey(0)
    k_x, k_w1, k_w2, k_w3, k_g, k_b = jax.random.split(key, 6)

    x = jax.random.normal(k_x, (B, S, H), jnp.float32)
    # Padding mask: batch 0 fully valid, batch 1 has last 3 positions padded.
    attn_mask = jnp.array([[1] * S, [1] * (S - 3) + [0] * 3], dtype=jnp.int32)

    params = {
        "Wqkvff": 0.02 * jax.random.normal(k_w1, (H, attn_size + mlp_size),
                                           jnp.float32),
        "W_attn_o": 0.02 * jax.random.normal(k_w2, (H, H), jnp.float32),
        "W_mlp_o": 0.02 * jax.random.normal(k_w3, (intermediate, H), jnp.float32),
        "norm_weight": jnp.ones((H,), jnp.float32)
        + 0.01 * jax.random.normal(k_g, (H,), jnp.float32),
        "norm_bias": 0.01 * jax.random.normal(k_b, (H,), jnp.float32),
    }

    out = flexbert_parallel_prenorm_layer(
        x, attn_mask, params, n_heads=n_heads, intermediate=intermediate)
    out = jax.block_until_ready(out)

    ref = reference(x, attn_mask, params, n_heads=n_heads,
                    intermediate=intermediate)
    assert out.shape == (B, S, H)
    # bf16 MXU boundaries + approx reciprocal -> slightly looser tolerance.
    assert jnp.allclose(out, ref, rtol=2e-2, atol=2e-2), (
        f"max abs err {jnp.max(jnp.abs(out - ref))}")

    print("KERNEL_OK")
</pallas_src>

<mosaic_0001>
module attributes {stable_mosaic.version = 11 : i64} {
  func.func @_ln_kv_kernel(%arg0: i32, %arg1: i32, %arg2: memref<1x8x32xf32, #tpu.memory_space<vmem>>, %arg3: memref<1x32xf32, #tpu.memory_space<vmem>>, %arg4: memref<1x32xf32, #tpu.memory_space<vmem>>, %arg5: memref<32x64xbf16, #tpu.memory_space<vmem>>, %arg6: memref<1x8x32xbf16, #tpu.memory_space<vmem>>, %arg7: memref<1x8x32xbf16, #tpu.memory_space<vmem>>, %arg8: memref<1x8x32xbf16, #tpu.memory_space<vmem>>) attributes {dimension_semantics = [#tpu.dimension_semantics<parallel>, #tpu.dimension_semantics<parallel>], iteration_bounds = array<i64: 2, 1>, scalar_prefetch = 0 : i64, scratch_operands = 0 : i64, tpu.core_type = #tpu.core_type<tc>, window_params = [{transform_indices = @transform_0, window_bounds = array<i64: 1, 8, 32>}, {pipeline_mode = #tpu.pipeline_mode<synchronous>, transform_indices = @transform_1, window_bounds = array<i64: 1, 32>}, {pipeline_mode = #tpu.pipeline_mode<synchronous>, transform_indices = @transform_2, window_bounds = array<i64: 1, 32>}, {pipeline_mode = #tpu.pipeline_mode<synchronous>, transform_indices = @transform_3, window_bounds = array<i64: 32, 64>}, {transform_indices = @transform_4, window_bounds = array<i64: 1, 8, 32>}, {transform_indices = @transform_5, window_bounds = array<i64: 1, 8, 32>}, {transform_indices = @transform_6, window_bounds = array<i64: 1, 8, 32>}]} {
    %c0 = arith.constant 0 : index
    %c0_0 = arith.constant 0 : index
    %c0_1 = arith.constant 0 : index
    %0 = vector.load %arg2[%c0, %c0_0, %c0_1] : memref<1x8x32xf32, #tpu.memory_space<vmem>>, vector<1x8x32xf32>
    %1 = vector.shape_cast %0 : vector<1x8x32xf32> to vector<8x32xf32>
    %cst = arith.constant dense<0.000000e+00> : vector<8xf32>
    %2 = vector.multi_reduction <add>, %1, %cst [1] : vector<8x32xf32> to vector<8xf32>
    %3 = vector.shape_cast %2 : vector<8xf32> to vector<8x1xf32>
    %cst_2 = arith.constant 3.200000e+01 : f32
    %4 = vector.broadcast %cst_2 : f32 to vector<8x1xf32>
    %5 = arith.divf %3, %4 : vector<8x1xf32>
    %6 = vector.broadcast %5 : vector<8x1xf32> to vector<8x32xf32>
    %7 = arith.subf %1, %6 : vector<8x32xf32>
    %8 = arith.mulf %7, %7 : vector<8x32xf32>
    %cst_3 = arith.constant dense<0.000000e+00> : vector<8xf32>
    %9 = vector.multi_reduction <add>, %8, %cst_3 [1] : vector<8x32xf32> to vector<8xf32>
    %10 = vector.shape_cast %9 : vector<8xf32> to vector<8x1xf32>
    %cst_4 = arith.constant 3.200000e+01 : f32
    %11 = vector.broadcast %cst_4 : f32 to vector<8x1xf32>
    %12 = arith.divf %10, %11 : vector<8x1xf32>
    %cst_5 = arith.constant 9.99999996E-13 : f32
    %13 = vector.broadcast %cst_5 : f32 to vector<8x1xf32>
    %14 = arith.addf %12, %13 : vector<8x1xf32>
    %15 = math.rsqrt %14 : vector<8x1xf32>
    %16 = vector.broadcast %15 : vector<8x1xf32> to vector<8x32xf32>
    %17 = arith.mulf %7, %16 : vector<8x32xf32>
    %c0_6 = arith.constant 0 : index
    %c0_7 = arith.constant 0 : index
    %18 = vector.load %arg3[%c0_6, %c0_7] : memref<1x32xf32, #tpu.memory_space<vmem>>, vector<1x32xf32>
    %19 = vector.broadcast %18 : vector<1x32xf32> to vector<8x32xf32>
    %20 = arith.mulf %17, %19 : vector<8x32xf32>
    %c0_8 = arith.constant 0 : index
    %c0_9 = arith.constant 0 : index
    %21 = vector.load %arg4[%c0_8, %c0_9] : memref<1x32xf32, #tpu.memory_space<vmem>>, vector<1x32xf32>
    %22 = vector.broadcast %21 : vector<1x32xf32> to vector<8x32xf32>
    %23 = arith.addf %20, %22 : vector<8x32xf32>
    %24 = arith.truncf %23 : vector<8x32xf32> to vector<8x32xbf16>
    %c0_10 = arith.constant 0 : index
    %c0_11 = arith.constant 0 : index
    %c0_12 = arith.constant 0 : index
    %25 = vector.load %arg6[%c0_10, %c0_11, %c0_12] : memref<1x8x32xbf16, #tpu.memory_space<vmem>>, vector<1x8x32xbf16>
    %26 = vector.shape_cast %25 : vector<1x8x32xbf16> to vector<8x32xbf16>
    %27 = vector.shape_cast %24 : vector<8x32xbf16> to vector<1x8x32xbf16>
    tpu.vector_store %arg6[%c0_10, %c0_11, %c0_12], %27 {strides = array<i32>} : memref<1x8x32xbf16, #tpu.memory_space<vmem>>, vector<1x8x32xbf16>,
    %c0_13 = arith.constant 0 : index
    %c0_14 = arith.constant 0 : index
    %28 = vector.load %arg5[%c0_13, %c0_14] : memref<32x64xbf16, #tpu.memory_space<vmem>>, vector<32x64xbf16>
    %cst_15 = arith.constant dense<0.000000e+00> : vector<8x64xf32>
    %29 = tpu.matmul %24, %28, %cst_15 {dimension_numbers = #tpu.dot_dimension_numbers<[1], [0], [0], [1], [0, 0, 1, 1], [], []>} : vector<8x32xbf16>, vector<32x64xbf16>, vector<8x64xf32> -> vector<8x64xf32>
    %30 = vector.extract_strided_slice %29 {offsets = [0, 0], sizes = [8, 32], strides = [1, 1]} : vector<8x64xf32> to vector<8x32xf32>
    %31 = arith.truncf %30 : vector<8x32xf32> to vector<8x32xbf16>
    %c0_16 = arith.constant 0 : index
    %c0_17 = arith.constant 0 : index
    %c0_18 = arith.constant 0 : index
    %32 = vector.load %arg7[%c0_16, %c0_17, %c0_18] : memref<1x8x32xbf16, #tpu.memory_space<vmem>>, vector<1x8x32xbf16>
    %33 = vector.shape_cast %32 : vector<1x8x32xbf16> to vector<8x32xbf16>
    %34 = vector.shape_cast %31 : vector<8x32xbf16> to vector<1x8x32xbf16>
    tpu.vector_store %arg7[%c0_16, %c0_17, %c0_18], %34 {strides = array<i32>} : memref<1x8x32xbf16, #tpu.memory_space<vmem>>, vector<1x8x32xbf16>,
    %35 = vector.extract_strided_slice %29 {offsets = [0, 32], sizes = [8, 32], strides = [1, 1]} : vector<8x64xf32> to vector<8x32xf32>
    %36 = arith.truncf %35 : vector<8x32xf32> to vector<8x32xbf16>
    %c0_19 = arith.constant 0 : index
    %c0_20 = arith.constant 0 : index
    %c0_21 = arith.constant 0 : index
    %37 = vector.load %arg8[%c0_19, %c0_20, %c0_21] : memref<1x8x32xbf16, #tpu.memory_space<vmem>>, vector<1x8x32xbf16>
    %38 = vector.shape_cast %37 : vector<1x8x32xbf16> to vector<8x32xbf16>
    %39 = vector.shape_cast %36 : vector<8x32xbf16> to vector<1x8x32xbf16>
    tpu.vector_store %arg8[%c0_19, %c0_20, %c0_21], %39 {strides = array<i32>} : memref<1x8x32xbf16, #tpu.memory_space<vmem>>, vector<1x8x32xbf16>,
    return
  }
  func.func @transform_0(%arg0: i32, %arg1: i32) -> (i32, i32, i32) {
    %c0_i32 = arith.constant 0 : i32
    %c0_i32_0 = arith.constant 0 : i32
    return %arg0, %arg1, %c0_i32 : i32, i32, i32
  }
  func.func @transform_1(%arg0: i32, %arg1: i32) -> (i32, i32) {
    %c0_i32 = arith.constant 0 : i32
    %c0_i32_0 = arith.constant 0 : i32
    %c0_i32_1 = arith.constant 0 : i32
    return %c0_i32, %c0_i32_0 : i32, i32
  }
  func.func @transform_2(%arg0: i32, %arg1: i32) -> (i32, i32) {
    %c0_i32 = arith.constant 0 : i32
    %c0_i32_0 = arith.constant 0 : i32
    %c0_i32_1 = arith.constant 0 : i32
    return %c0_i32, %c0_i32_0 : i32, i32
  }
  func.func @transform_3(%arg0: i32, %arg1: i32) -> (i32, i32) {
    %c0_i32 = arith.constant 0 : i32
    %c0_i32_0 = arith.constant 0 : i32
    %c0_i32_1 = arith.constant 0 : i32
    return %c0_i32, %c0_i32_0 : i32, i32
  }
  func.func @transform_4(%arg0: i32, %arg1: i32) -> (i32, i32, i32) {
    %c0_i32 = arith.constant 0 : i32
    %c0_i32_0 = arith.constant 0 : i32
    return %arg0, %arg1, %c0_i32 : i32, i32, i32
  }
  func.func @transform_5(%arg0: i32, %arg1: i32) -> (i32, i32, i32) {
    %c0_i32 = arith.constant 0 : i32
    %c0_i32_0 = arith.constant 0 : i32
    return %arg0, %arg1, %c0_i32 : i32, i32, i32
  }
  func.func @transform_6(%arg0: i32, %arg1: i32) -> (i32, i32, i32) {
    %c0_i32 = arith.constant 0 : i32
    %c0_i32_0 = arith.constant 0 : i32
    return %arg0, %arg1, %c0_i32 : i32, i32, i32
  }
}

module attributes {stable_mosaic.version = 11 : i64} {
  func.func @_ln_kv_kernel(%arg0: i32, %arg1: i32, %arg2: memref<1x8x32xf32, #tpu.memory_space<vmem>>, %arg3: memref<1x32xf32, #tpu.memory_space<vmem>>, %arg4: memref<1x32xf32, #tpu.memory_space<vmem>>, %arg5: memref<32x64xbf16, #tpu.memory_space<vmem>>, %arg6: memref<1x8x32xbf16, #tpu.memory_space<vmem>>, %arg7: memref<1x8x32xbf16, #tpu.memory_space<vmem>>, %arg8: memref<1x8x32xbf16, #tpu.memory_space<vmem>>) attributes {dimension_semantics = [#tpu.dimension_semantics<parallel>, #tpu.dimension_semantics<parallel>], iteration_bounds = array<i64: 2, 1>, scalar_prefetch = 0 : i64, scratch_operands = 0 : i64, tpu.core_type = #tpu.core_type<tc>, window_params = [{transform_indices = @transform_0, window_bounds = array<i64: 1, 8, 32>}, {pipeline_mode = #tpu.pipeline_mode<synchronous>, transform_indices = @transform_1, window_bounds = array<i64: 1, 32>}, {pipeline_mode = #tpu.pipeline_mode<synchronous>, transform_indices = @transform_2, window_bounds = array<i64: 1, 32>}, {pipeline_mode = #tpu.pipeline_mode<synchronous>, transform_indices = @transform_3, window_bounds = array<i64: 32, 64>}, {transform_indices = @transform_4, window_bounds = array<i64: 1, 8, 32>}, {transform_indices = @transform_5, window_bounds = array<i64: 1, 8, 32>}, {transform_indices = @transform_6, window_bounds = array<i64: 1, 8, 32>}]} {
    %c0 = arith.constant 0 : index
    %c0_0 = arith.constant 0 : index
    %c0_1 = arith.constant 0 : index
    %0 = vector.load %arg2[%c0, %c0_0, %c0_1] : memref<1x8x32xf32, #tpu.memory_space<vmem>>, vector<1x8x32xf32>
    %1 = vector.shape_cast %0 : vector<1x8x32xf32> to vector<8x32xf32>
    %cst = arith.constant dense<0.000000e+00> : vector<8xf32>
    %2 = vector.multi_reduction <add>, %1, %cst [1] : vector<8x32xf32> to vector<8xf32>
    %3 = vector.shape_cast %2 : vector<8xf32> to vector<8x1xf32>
    %cst_2 = arith.constant 3.200000e+01 : f32
    %4 = vector.broadcast %cst_2 : f32 to vector<8x1xf32>
    %5 = arith.divf %3, %4 : vector<8x1xf32>
    %6 = vector.broadcast %5 : vector<8x1xf32> to vector<8x32xf32>
    %7 = arith.subf %1, %6 : vector<8x32xf32>
    %8 = arith.mulf %7, %7 : vector<8x32xf32>
    %cst_3 = arith.constant dense<0.000000e+00> : vector<8xf32>
    %9 = vector.multi_reduction <add>, %8, %cst_3 [1] : vector<8x32xf32> to vector<8xf32>
    %10 = vector.shape_cast %9 : vector<8xf32> to vector<8x1xf32>
    %cst_4 = arith.constant 3.200000e+01 : f32
    %11 = vector.broadcast %cst_4 : f32 to vector<8x1xf32>
    %12 = arith.divf %10, %11 : vector<8x1xf32>
    %cst_5 = arith.constant 9.99999996E-13 : f32
    %13 = vector.broadcast %cst_5 : f32 to vector<8x1xf32>
    %14 = arith.addf %12, %13 : vector<8x1xf32>
    %15 = math.rsqrt %14 : vector<8x1xf32>
    %16 = vector.broadcast %15 : vector<8x1xf32> to vector<8x32xf32>
    %17 = arith.mulf %7, %16 : vector<8x32xf32>
    %c0_6 = arith.constant 0 : index
    %c0_7 = arith.constant 0 : index
    %18 = vector.load %arg3[%c0_6, %c0_7] : memref<1x32xf32, #tpu.memory_space<vmem>>, vector<1x32xf32>
    %19 = vector.broadcast %18 : vector<1x32xf32> to vector<8x32xf32>
    %20 = arith.mulf %17, %19 : vector<8x32xf32>
    %c0_8 = arith.constant 0 : index
    %c0_9 = arith.constant 0 : index
    %21 = vector.load %arg4[%c0_8, %c0_9] : memref<1x32xf32, #tpu.memory_space<vmem>>, vector<1x32xf32>
    %22 = vector.broadcast %21 : vector<1x32xf32> to vector<8x32xf32>
    %23 = arith.addf %20, %22 : vector<8x32xf32>
    %24 = arith.truncf %23 : vector<8x32xf32> to vector<8x32xbf16>
    %c0_10 = arith.constant 0 : index
    %c0_11 = arith.constant 0 : index
    %c0_12 = arith.constant 0 : index
    %25 = vector.load %arg6[%c0_10, %c0_11, %c0_12] : memref<1x8x32xbf16, #tpu.memory_space<vmem>>, vector<1x8x32xbf16>
    %26 = vector.shape_cast %25 : vector<1x8x32xbf16> to vector<8x32xbf16>
    %27 = vector.shape_cast %24 : vector<8x32xbf16> to vector<1x8x32xbf16>
    tpu.vector_store %arg6[%c0_10, %c0_11, %c0_12], %27 {strides = array<i32>} : memref<1x8x32xbf16, #tpu.memory_space<vmem>>, vector<1x8x32xbf16>,
    %c0_13 = arith.constant 0 : index
    %c0_14 = arith.constant 0 : index
    %28 = vector.load %arg5[%c0_13, %c0_14] : memref<32x64xbf16, #tpu.memory_space<vmem>>, vector<32x64xbf16>
    %cst_15 = arith.constant dense<0.000000e+00> : vector<8x64xf32>
    %29 = tpu.matmul %24, %28, %cst_15 {dimension_numbers = #tpu.dot_dimension_numbers<[1], [0], [0], [1], [0, 0, 1, 1], [], []>} : vector<8x32xbf16>, vector<32x64xbf16>, vector<8x64xf32> -> vector<8x64xf32>
    %30 = vector.extract_strided_slice %29 {offsets = [0, 0], sizes = [8, 32], strides = [1, 1]} : vector<8x64xf32> to vector<8x32xf32>
    %31 = arith.truncf %30 : vector<8x32xf32> to vector<8x32xbf16>
    %c0_16 = arith.constant 0 : index
    %c0_17 = arith.constant 0 : index
    %c0_18 = arith.constant 0 : index
    %32 = vector.load %arg7[%c0_16, %c0_17, %c0_18] : memref<1x8x32xbf16, #tpu.memory_space<vmem>>, vector<1x8x32xbf16>
    %33 = vector.shape_cast %32 : vector<1x8x32xbf16> to vector<8x32xbf16>
    %34 = vector.shape_cast %31 : vector<8x32xbf16> to vector<1x8x32xbf16>
    tpu.vector_store %arg7[%c0_16, %c0_17, %c0_18], %34 {strides = array<i32>} : memref<1x8x32xbf16, #tpu.memory_space<vmem>>, vector<1x8x32xbf16>,
    %35 = vector.extract_strided_slice %29 {offsets = [0, 32], sizes = [8, 32], strides = [1, 1]} : vector<8x64xf32> to vector<8x32xf32>
    %36 = arith.truncf %35 : vector<8x32xf32> to vector<8x32xbf16>
    %c0_19 = arith.constant 0 : index
    %c0_20 = arith.constant 0 : index
    %c0_21 = arith.constant 0 : index
    %37 = vector.load %arg8[%c0_19, %c0_20, %c0_21] : memref<1x8x32xbf16, #tpu.memory_space<vmem>>, vector<1x8x32xbf16>
    %38 = vector.shape_cast %37 : vector<1x8x32xbf16> to vector<8x32xbf16>
    %39 = vector.shape_cast %36 : vector<8x32xbf16> to vector<1x8x32xbf16>
    tpu.vector_store %arg8[%c0_19, %c0_20, %c0_21], %39 {strides = array<i32>} : memref<1x8x32xbf16, #tpu.memory_space<vmem>>, vector<1x8x32xbf16>,
    return
  }
  func.func @transform_0(%arg0: i32, %arg1: i32) -> (i32, i32, i32) {
    %c0_i32 = arith.constant 0 : i32
    %c0_i32_0 = arith.constant 0 : i32
    return %arg0, %arg1, %c0_i32 : i32, i32, i32
  }
  func.func @transform_1(%arg0: i32, %arg1: i32) -> (i32, i32) {
    %c0_i32 = arith.constant 0 : i32
    %c0_i32_0 = arith.constant 0 : i32
    %c0_i32_1 = arith.constant 0 : i32
    return %c0_i32, %c0_i32_0 : i32, i32
  }
  func.func @transform_2(%arg0: i32, %arg1: i32) -> (i32, i32) {
    %c0_i32 = arith.constant 0 : i32
    %c0_i32_0 = arith.constant 0 : i32
    %c0_i32_1 = arith.constant 0 : i32
    return %c0_i32, %c0_i32_0 : i32, i32
  }
  func.func @transform_3(%arg0: i32, %arg1: i32) -> (i32, i32) {
    %c0_i32 = arith.constant 0 : i32
    %c0_i32_0 = arith.constant 0 : i32
    %c0_i32_1 = arith.constant 0 : i32
    return %c0_i32, %c0_i32_0 : i32, i32
  }
  func.func @transform_4(%arg0: i32, %arg1: i32) -> (i32, i32, i32) {
    %c0_i32 = arith.constant 0 : i32
    %c0_i32_0 = arith.constant 0 : i32
    return %arg0, %arg1, %c0_i32 : i32, i32, i32
  }
  func.func @transform_5(%arg0: i32, %arg1: i32) -> (i32, i32, i32) {
    %c0_i32 = arith.constant 0 : i32
    %c0_i32_0 = arith.constant 0 : i32
    return %arg0, %arg1, %c0_i32 : i32, i32, i32
  }
  func.func @transform_6(%arg0: i32, %arg1: i32) -> (i32, i32, i32) {
    %c0_i32 = arith.constant 0 : i32
    %c0_i32_0 = arith.constant 0 : i32
    return %arg0, %arg1, %c0_i32 : i32, i32, i32
  }
}

</mosaic_0001>

<llo_original>
// kernel: tpu_custom_call.1
$region0: #{tpu_custom_call.1}
  #allocation0 [shape = 'u32[]', space=smem, size = 0x4, offset = 0x4, fixed_abs, tag = 'smem constant byte address 0x4 - core index']
  #allocation1 [shape = 'u32[144,128]{1,0:T(1,128)}', space=vmem, size = 0x12000, scoped, tag = 'internal scratch']
  %s0 = inlined_call_operand.hbm [shape: f32[2,8,32], index: 0, kind: input, shape index: {}]
  %s1 = inlined_call_operand.hbm [shape: f32[1,32], index: 1, kind: input, shape index: {}]
  %s2 = inlined_call_operand.hbm [shape: f32[1,32], index: 2, kind: input, shape index: {}]
  %s3 = inlined_call_operand.hbm [shape: bf16[32,64], index: 3, kind: input, shape index: {}]
  %s4 = inlined_call_operand.hbm [shape: bf16[2,8,32], index: 4, kind: output, shape index: {0}]
  %s5 = inlined_call_operand.hbm [shape: bf16[2,8,32], index: 5, kind: output, shape index: {1}]
  %s6 = inlined_call_operand.hbm [shape: bf16[2,8,32], index: 6, kind: output, shape index: {2}]
  %7 = xla_tuple %s4, %s5, %s6
  %s8 = sld [smem:[#allocation0]]
  $region81: #{tpu_custom_call.1} parent=0
    _
  %s10 = ssub.s32 1, %s8
  %s11 = scalar_select 0, %s10, %s8
  $region1: #{tpu_custom_call.1} parent=0
    #allocation2 [shape = 'u8[8192]{0}', space=vmem, size = 0x2000, scoped, tag = 'input window, operand 0']
    #allocation3 [shape = 's32[2]{0}', space=sflag, size = 0x8, scoped, tag = 'scoped memory for tpu_custom_call.1']
    #allocation4 [shape = 's32[2]{0}', space=sflag, size = 0x8, scoped, tag = 'scoped memory for tpu_custom_call.1']
    #allocation5 [shape = 'u8[512]{0}', space=vmem, size = 0x400, scoped, tag = 'input window, operand 1, single buffered']
    #allocation6 [shape = 's32[1]{0}', space=sflag, size = 0x4, scoped, tag = 'scoped memory for tpu_custom_call.1']
    #allocation7 [shape = 'u8[512]{0}', space=vmem, size = 0x400, scoped, tag = 'input window, operand 2, single buffered']
    #allocation8 [shape = 'u8[8192]{0}', space=vmem, size = 0x2000, scoped, tag = 'input window, operand 3, single buffered']
    #allocation9 [shape = 's32[1]{0}', space=sflag, size = 0x4, scoped, tag = 'scoped memory for tpu_custom_call.1']
    #allocation10 [shape = 'u8[4096]{0}', space=vmem, size = 0x1000, scoped, tag = 'output window, operand 0']
    #allocation11 [shape = 'u8[4096]{0}', space=vmem, size = 0x1000, scoped, tag = 'output window, operand 1']
    #allocation12 [shape = 's32[2]{0}', space=sflag, size = 0x8, scoped, tag = 'scoped memory for tpu_custom_call.1']
    #allocation13 [shape = 'u8[4096]{0}', space=vmem, size = 0x1000, scoped, tag = 'output window, operand 2']
    %12 = vsyncpa [#allocation3], 0
    %s13 = scalar_lea.sflag [#allocation3], 1
    %14 = vsyncpa %s13, 0
    %15 = vsyncpa [#allocation6], 0
    %16 = vsyncpa [#allocation9], 0
    %17 = vsyncpa [#allocation4], 0
    %s18 = scalar_lea.sflag [#allocation4], 1
    %19 = vsyncpa %s18, 0
    %20 = vsyncpa [#allocation12], 0
    %s21 = scalar_lea.sflag [#allocation12], 1
    %22 = vsyncpa %s21, 0
    loop: start=0, step=1, limit=4
    $region2: #{tpu_custom_call.1} parent=1 // loop_pre_header
      _
    $region3: #{tpu_custom_call.1} parent=1 // loop_header
      %s24 = sphi 0, %s28
      %p25 = scmp.ge.s32.totalorder %s24, 4
      %s31 = sphi 0, %s43
      %s32 = sphi 0, %s39
      %s33 = sphi 0, %s31
      %s34 = sphi 0, %s32
      %s35 = sphi 0, %s33
      %s36 = sphi 0, %s34
      %s48 = sphi 0, %s50
      %s51 = sphi 0, %s48
      %s52 = sphi 0, %s51
      %s68 = sphi 0, %s52
      %s72 = sphi 0, %s72
      %s74 = sphi 0, %s72
      %s75 = sphi 0, %s74
      %s89 = sphi 0, %s75
      %s93 = sphi 0, %s93
      %s95 = sphi 0, %s93
      %s96 = sphi 0, %s95
      %s110 = sphi 0, %s96
      %s114 = sphi 0, %s114
      %s116 = sphi 0, %s114
      %s117 = sphi 0, %s116
      %s131 = sphi 0, %s117
      %s139 = sphi 0, %s141
      %s142 = sphi 0, %s139
      %s143 = sphi 0, %s142
      %s159 = sphi 0, %s143
      %s167 = sphi 0, %s169
      %s170 = sphi 0, %s167
      %s171 = sphi 0, %s170
      %s187 = sphi 0, %s171
      %s195 = sphi 0, %s197
      %s198 = sphi 0, %s195
      %s199 = sphi 0, %s198
      %s215 = sphi 0, %s199
    $region4: #{tpu_custom_call.1} parent=1 // loop_header_branch
      %27 = sbr.rel (%p25) target = $region8
    $region5: #{tpu_custom_call.1} parent=1 // loop_body
      %s29 = ssub.s32 %s24, 1
      %s30 = ssub.s32 %s24, 2
      %s37 = sadd.s32 1, %s32
      %p38 = scmp.ge.s32.totalorder %s37, 1
      %s39 = scalar_select %p38, 0, %s37
      %s40 = sadd.s32 1, %s31
      %s41 = scalar_select %p38, %s40, %s31
      %p42 = scmp.ge.s32.totalorder %s41, 2
      %s43 = scalar_select %p42, 0, %s41
      %s44 = ssub.s32 %s31, %s43
      %s45 = ssub.s32 %s32, %s39
      %s46 = sor.u32 %s44, %s45
      %p47 = scmp.eq.s32.totalorder %s46, 0
      %s49 = sadd.s32 %s48, 1
      %s50 = scalar_select %p47, %s48, %s49
      %p53 = pneg %p47
      %p54 = scmp.eq.s32.totalorder %s24, 1
      %p55 = por %p53, %p54
      %p56 = scmp.ne.s32.totalorder %s48, %s51
      %p57 = scmp.eq.s32.totalorder %s24, 0
      %p58 = por %p56, %p57
      %p59 = scmp.ne.s32.totalorder %s48, %s51
      %p60 = scmp.eq.s32.totalorder %s29, 1
      %p61 = por %p59, %p60
      %p62 = scmp.ne.s32.totalorder %s51, %s52
      %p63 = scmp.eq.s32.totalorder %s29, 0
      %p64 = por %p62, %p63
      %p65 = scmp.ne.s32.totalorder %s51, %s52
      %p66 = scmp.eq.s32.totalorder %s30, 1
      %p67 = por %p65, %p66
      %p69 = scmp.ne.s32.totalorder %s52, %s68
      %p70 = scmp.eq.s32.totalorder %s30, 0
      %p71 = por %p69, %p70
      %s73 = sadd.s32 %s72, 1
      %p76 = scmp.eq.s32.totalorder %s24, 1
      %p77 = scmp.ne.s32.totalorder %s72, %s74
      %p78 = scmp.eq.s32.totalorder %s24, 0
      %p79 = por %p77, %p78
      %p80 = scmp.ne.s32.totalorder %s72, %s74
      %p81 = scmp.eq.s32.totalorder %s29, 1
      %p82 = por %p80, %p81
      %p83 = scmp.ne.s32.totalorder %s74, %s75
      %p84 = scmp.eq.s32.totalorder %s29, 0
      %p85 = por %p83, %p84
      %p86 = scmp.ne.s32.totalorder %s74, %s75
      %p87 = scmp.eq.s32.totalorder %s30, 1
      %p88 = por %p86, %p87
      %p90 = scmp.ne.s32.totalorder %s75, %s89
      %p91 = scmp.eq.s32.totalorder %s30, 0
      %p92 = por %p90, %p91
      %s94 = sadd.s32 %s93, 1
      %p97 = scmp.eq.s32.totalorder %s24, 1
      %p98 = scmp.ne.s32.totalorder %s93, %s95
      %p99 = scmp.eq.s32.totalorder %s24, 0
      %p100 = por %p98, %p99
      %p101 = scmp.ne.s32.totalorder %s93, %s95
      %p102 = scmp.eq.s32.totalorder %s29, 1
      %p103 = por %p101, %p102
      %p104 = scmp.ne.s32.totalorder %s95, %s96
      %p105 = scmp.eq.s32.totalorder %s29, 0
      %p106 = por %p104, %p105
      %p107 = scmp.ne.s32.totalorder %s95, %s96
      %p108 = scmp.eq.s32.totalorder %s30, 1
      %p109 = por %p107, %p108
      %p111 = scmp.ne.s32.totalorder %s96, %s110
      %p112 = scmp.eq.s32.totalorder %s30, 0
      %p113 = por %p111, %p112
      %s115 = sadd.s32 %s114, 1
      %p118 = scmp.eq.s32.totalorder %s24, 1
      %p119 = scmp.ne.s32.totalorder %s114, %s116
      %p120 = scmp.eq.s32.totalorder %s24, 0
      %p121 = por %p119, %p120
      %p122 = scmp.ne.s32.totalorder %s114, %s116
      %p123 = scmp.eq.s32.totalorder %s29, 1
      %p124 = por %p122, %p123
      %p125 = scmp.ne.s32.totalorder %s116, %s117
      %p126 = scmp.eq.s32.totalorder %s29, 0
      %p127 = por %p125, %p126
      %p128 = scmp.ne.s32.totalorder %s116, %s117
      %p129 = scmp.eq.s32.totalorder %s30, 1
      %p130 = por %p128, %p129
      %p132 = scmp.ne.s32.totalorder %s117, %s131
      %p133 = scmp.eq.s32.totalorder %s30, 0
      %p134 = por %p132, %p133
      %s135 = ssub.s32 %s31, %s43
      %s136 = ssub.s32 %s32, %s39
      %s137 = sor.u32 %s135, %s136
      %p138 = scmp.eq.s32.totalorder %s137, 0
      %s140 = sadd.s32 %s139, 1
      %s141 = scalar_select %p138, %s139, %s140
      %p144 = pneg %p138
      %p145 = scmp.eq.s32.totalorder %s24, 1
      %p146 = por %p144, %p145
      %p147 = scmp.ne.s32.totalorder %s139, %s142
      %p148 = scmp.eq.s32.totalorder %s24, 0
      %p149 = por %p147, %p148
      %p150 = scmp.ne.s32.totalorder %s139, %s142
      %p151 = scmp.eq.s32.totalorder %s29, 1
      %p152 = por %p150, %p151
      %p153 = scmp.ne.s32.totalorder %s142, %s143
      %p154 = scmp.eq.s32.totalorder %s29, 0
      %p155 = por %p153, %p154
      %p156 = scmp.ne.s32.totalorder %s142, %s143
      %p157 = scmp.eq.s32.totalorder %s30, 1
      %p158 = por %p156, %p157
      %p160 = scmp.ne.s32.totalorder %s143, %s159
      %p161 = scmp.eq.s32.totalorder %s30, 0
      %p162 = por %p160, %p161
      %s163 = ssub.s32 %s31, %s43
      %s164 = ssub.s32 %s32, %s39
      %s165 = sor.u32 %s163, %s164
      %p166 = scmp.eq.s32.totalorder %s165, 0
      %s168 = sadd.s32 %s167, 1
      %s169 = scalar_select %p166, %s167, %s168
      %p172 = pneg %p166
      %p173 = scmp.eq.s32.totalorder %s24, 1
      %p174 = por %p172, %p173
      %p175 = scmp.ne.s32.totalorder %s167, %s170
      %p176 = scmp.eq.s32.totalorder %s24, 0
      %p177 = por %p175, %p176
      %p178 = scmp.ne.s32.totalorder %s167, %s170
      %p179 = scmp.eq.s32.totalorder %s29, 1
      %p180 = por %p178, %p179
      %p181 = scmp.ne.s32.totalorder %s170, %s171
      %p182 = scmp.eq.s32.totalorder %s29, 0
      %p183 = por %p181, %p182
      %p184 = scmp.ne.s32.totalorder %s170, %s171
      %p185 = scmp.eq.s32.totalorder %s30, 1
      %p186 = por %p184, %p185
      %p188 = scmp.ne.s32.totalorder %s171, %s187
      %p189 = scmp.eq.s32.totalorder %s30, 0
      %p190 = por %p188, %p189
      %s191 = ssub.s32 %s31, %s43
      %s192 = ssub.s32 %s32, %s39
      %s193 = sor.u32 %s191, %s192
      %p194 = scmp.eq.s32.totalorder %s193, 0
      %s196 = sadd.s32 %s195, 1
      %s197 = scalar_select %p194, %s195, %s196
      %p200 = pneg %p194
      %p201 = scmp.eq.s32.totalorder %s24, 1
      %p202 = por %p200, %p201
      %p203 = scmp.ne.s32.totalorder %s195, %s198
      %p204 = scmp.eq.s32.totalorder %s24, 0
      %p205 = por %p203, %p204
      %p206 = scmp.ne.s32.totalorder %s195, %s198
      %p207 = scmp.eq.s32.totalorder %s29, 1
      %p208 = por %p206, %p207
      %p209 = scmp.ne.s32.totalorder %s198, %s199
      %p210 = scmp.eq.s32.totalorder %s29, 0
      %p211 = por %p209, %p210
      %p212 = scmp.ne.s32.totalorder %s198, %s199
      %p213 = scmp.eq.s32.totalorder %s30, 1
      %p214 = por %p212, %p213
      %p216 = scmp.ne.s32.totalorder %s199, %s215
      %p217 = scmp.eq.s32.totalorder %s30, 0
      %p218 = por %p216, %p217
      %p219 = scmp.le.s32.totalorder 1, %s24
      %p220 = scmp.lt.s32.totalorder %s24, 3
      %p221 = pnand %p219, %p220
      %p222 = pneg %p221
      // Predicated region
      $region9: #{tpu_custom_call.1} parent=5 // pred_check
        _
      $region10: #{tpu_custom_call.1} parent=5 // pred_check_branch
        %224 = sbr.rel (%p221) target = $region12
      $region11: #{tpu_custom_call.1} parent=5 // pred_region
        %s225 = ssub.s32 %s24, 1
        // Predicated region
        $region13: #{tpu_custom_call.1} parent=11 // pred_check
          %p226 = pneg %p85
        $region14: #{tpu_custom_call.1} parent=11 // pred_check_branch
          %228 = sbr.rel (%p226) target = $region16
        $region15: #{tpu_custom_call.1} parent=11 // pred_region
          %s230 = ssub.s32 16, 16
          %231 = vsyncadd [#allocation6], %s230
          %s233 = sshll.u32 [#allocation5], 4
          %s234 = int_to_ptr.vmem [resolvable:$true] %s233
          %236 = dma.hbm_to_vmem [thread:$0]  %s1, 16, %s234, [#allocation6]
        $region16: #{tpu_custom_call.1} parent=11 // pred_fallthru
          _
        // Predicated region
        $region17: #{tpu_custom_call.1} parent=11 // pred_check
          %p237 = pneg %p106
        $region18: #{tpu_custom_call.1} parent=11 // pred_check_branch
          %239 = sbr.rel (%p237) target = $region20
        $region19: #{tpu_custom_call.1} parent=11 // pred_region
          %s241 = ssub.s32 16, 16
          %242 = vsyncadd [#allocation6], %s241
          %s244 = sshll.u32 [#allocation7], 4
          %s245 = int_to_ptr.vmem [resolvable:$true] %s244
          %247 = dma.hbm_to_vmem [thread:$0]  %s2, 16, %s245, [#allocation6]
        $region20: #{tpu_custom_call.1} parent=11 // pred_fallthru
          _
        // Predicated region
        $region21: #{tpu_custom_call.1} parent=11 // pred_check
          %p248 = pneg %p127
        $region22: #{tpu_custom_call.1} parent=11 // pred_check_branch
          %250 = sbr.rel (%p248) target = $region24
        $region23: #{tpu_custom_call.1} parent=11 // pred_region
          %s252 = ssub.s32 256, 256
          %253 = vsyncadd [#allocation9], %s252
          %s254 = sshll.u32 [#allocation8], 4
          %s255 = int_to_ptr.vmem [resolvable:$true] %s254
          %260 = dma.hbm_to_vmem [thread:$0]  %s3, 256, %s255, [#allocation9], 64, 64, 4
        $region24: #{tpu_custom_call.1} parent=11 // pred_fallthru
          _
      $region12: #{tpu_custom_call.1} parent=5 // pred_fallthru
        _
      %p261 = scmp.lt.s32.totalorder %s24, 2
      // Predicated region
      $region25: #{tpu_custom_call.1} parent=5 // pred_check
        %p262 = pneg %p261
      $region26: #{tpu_custom_call.1} parent=5 // pred_check_branch
        %264 = sbr.rel (%p262) target = $region28
      $region27: #{tpu_custom_call.1} parent=5 // pred_region
        // Predicated region
        $region29: #{tpu_custom_call.1} parent=27 // pred_check
          %p265 = pneg %p58
        $region30: #{tpu_custom_call.1} parent=27 // pred_check_branch
          %267 = sbr.rel (%p265) target = $region32
        $region31: #{tpu_custom_call.1} parent=27 // pred_region
          %s268 = sand.u32 %s48, 1
          %s269 = scalar_lea.sflag [#allocation3], %s268
          %s270 = sand.u32 %s48, 1
          %s271 = smul.addr %s270, 8
          %s272 = scalar_lea.vmem [#allocation2], %s271
          %s274 = ssub.s32 128, 128
          %275 = vsyncadd %s269, %s274
          %s276 = sadd.s32 %s32, %s31
          %s277 = smul.addr %s276, 128
          %s278 = scalar_lea.hbm %s0, %s277
          %s280 = sshll.u32 %s272, 4
          %s281 = int_to_ptr.vmem [resolvable:$true] %s280
          %283 = dma.hbm_to_vmem [thread:$0]  %s278, 128, %s281, %s269
        $region32: #{tpu_custom_call.1} parent=27 // pred_fallthru
          _
      $region28: #{tpu_custom_call.1} parent=5 // pred_fallthru
        _
      %p284 = scmp.le.s32.totalorder 1, %s24
      %p285 = scmp.lt.s32.totalorder %s24, 3
      %p286 = pnand %p284, %p285
      %p287 = pneg %p286
      // Predicated region
      $region33: #{tpu_custom_call.1} parent=5 // pred_check
        _
      $region34: #{tpu_custom_call.1} parent=5 // pred_check_branch
        %289 = sbr.rel (%p286) target = $region36
      $region35: #{tpu_custom_call.1} parent=5 // pred_region
        %s290 = ssub.s32 %s24, 1
        %s291 = sand.u32 %s51, 1
        %s292 = scalar_lea.sflag [#allocation3], %s291
        %s293 = sand.u32 %s51, 1
        %s294 = smul.addr %s293, 8
        %s295 = scalar_lea.vmem [#allocation2], %s294
        // Predicated region
        $region37: #{tpu_custom_call.1} parent=35 // pred_check
          %p296 = pneg %p64
        $region38: #{tpu_custom_call.1} parent=35 // pred_check_branch
          %298 = sbr.rel (%p296) target = $region40
        $region39: #{tpu_custom_call.1} parent=35 // pred_region
          %299 = dma.done %s292, 128
        $region40: #{tpu_custom_call.1} parent=35 // pred_fallthru
          _
        // Predicated region
        $region41: #{tpu_custom_call.1} parent=35 // pred_check
          %p300 = pneg %p85
        $region42: #{tpu_custom_call.1} parent=35 // pred_check_branch
          %302 = sbr.rel (%p300) target = $region44
        $region43: #{tpu_custom_call.1} parent=35 // pred_region
          %303 = dma.done [#allocation6], 16
        $region44: #{tpu_custom_call.1} parent=35 // pred_fallthru
          _
        // Predicated region
        $region45: #{tpu_custom_call.1} parent=35 // pred_check
          %p304 = pneg %p106
        $region46: #{tpu_custom_call.1} parent=35 // pred_check_branch
          %306 = sbr.rel (%p304) target = $region48
        $region47: #{tpu_custom_call.1} parent=35 // pred_region
          %307 = dma.done [#allocation6], 16
        $region48: #{tpu_custom_call.1} parent=35 // pred_fallthru
          _
        // Predicated region
        $region49: #{tpu_custom_call.1} parent=35 // pred_check
          %p308 = pneg %p127
        $region50: #{tpu_custom_call.1} parent=35 // pred_check_branch
          %310 = sbr.rel (%p308) target = $region52
        $region51: #{tpu_custom_call.1} parent=35 // pred_region
          %311 = dma.done [#allocation9], 256
        $region52: #{tpu_custom_call.1} parent=35 // pred_fallthru
          _
        %s312 = sand.u32 %s51, 1
        %s313 = scalar_lea.sflag [#allocation3], %s312
        %s314 = sand.u32 %s51, 1
        %s315 = smul.addr %s314, 8
        %s316 = scalar_lea.vmem [#allocation2], %s315
        %p317 = pneg %p64
        %p318 = pneg %p61
        %p319 = pneg %p85
        %p320 = pneg %p82
        %p321 = pneg %p106
        %p322 = pneg %p103
        %p323 = pneg %p127
        %p324 = pneg %p124
        %p325 = pneg %p155
        %p326 = pneg %p152
        %s327 = sand.u32 %s142, 1
        %s328 = scalar_lea.sflag [#allocation4], %s327
        %s329 = sand.u32 %s142, 1
        %s330 = smul.addr %s329, 4
        %s331 = scalar_lea.vmem [#allocation10], %s330
        %p332 = pneg %p183
        %p333 = pneg %p180
        %s334 = sand.u32 %s29, 1
        %s335 = scalar_lea.sflag [#allocation12], %s334
        %s336 = sand.u32 %s170, 1
        %s337 = smul.addr %s336, 4
        %s338 = scalar_lea.vmem [#allocation11], %s337
        %p339 = pneg %p211
        %p340 = pneg %p208
        %s341 = sand.u32 %s29, 1
        %s342 = scalar_lea.sflag [#allocation12], %s341
        %s343 = sand.u32 %s198, 1
        %s344 = smul.addr %s343, 4
        %s345 = scalar_lea.vmem [#allocation13], %s344
        %v347 = vld [vmem:[%s295] sm:$0xff]
        %vm348 = vcmask 261120
        %v349 = vsel %vm348, %v347, 0.0
        %350 = vadd.xlane.f32.xlu0 %v349
        %v351 = vpop.xlane.xlu0 %350
        %v352 = vrcp.pop 32.0
        %v353 = vmul.f32 %v351, %v352
        %v354 = vsub.f32 %v347, %v353
        %v355 = vmul.f32 %v354, %v354
        %v356 = vsel %vm348, %v355, 0.0
        %357 = vadd.xlane.f32.xlu0 %v356
        %v358 = vpop.xlane.xlu0 %357
        %v359 = vmul.f32 %v358, %v352
        %v360 = vadd.f32 %v359, 1e-12
        %v361 = vrsqrt.pop %v360
        %v362 = vmul.f32 %v354, %v361
        %v363 = vld [vmem:[#allocation5] sm:$0x1]
        %v365 = vlaneseq
        %v366 = vshrl.u32 %v365, 7
        %v367 = vsub.s32 0, %v366
        %v368 = vrot.slane %v363, %v367
        %v370 = vmul.f32 %v362, %v368
        %v371 = vld [vmem:[#allocation7] sm:$0x1]
        %v373 = vlaneseq
        %v374 = vshrl.u32 %v373, 7
        %v375 = vsub.s32 0, %v374
        %v376 = vrot.slane %v371, %v375
        %v378 = vadd.f32 %v370, %v376
        %v379 = vpack.c.bf16 %v378, %v378
        %vm380 = vcmask 257024
        %381 = vst.msk [vmem:[%s331] sm:$0xf] %vm380, %v379
        %v382 = vld [vmem:[#allocation8] sm:$0xf]
        %v383 = vld [vmem:[#allocation8 + $0x4] sm:$0xf]
        %v384 = vld [vmem:[#allocation8 + $0x8] sm:$0xf]
        %v385 = vld [vmem:[#allocation8 + $0xc] sm:$0xf]
        %v390 = vunpack.c.l.b16 %v382
        %v391 = vunpack.c.l.b16 %v383
        %v392 = vunpack.c.l.b16 %v384
        %v393 = vunpack.c.l.b16 %v385
        %v394 = vpack.c.b16 %v391, %v390
        %v395 = vpack.c.b16 %v393, %v392
        %v399 = vsel %vm348, %v379, 0
        %401 = vmatprep.subr.bf16.mxu0 0
        %402 = vmatpush1.bf16.msra.mxu0 %v394
        %403 = vmatprep.subr.bf16.mxu0 0
        %404 = vmatpush1.bf16.msra.mxu0 %v395
        %405 = vmatprep.subr.bf16.mxu0 0
        %406 = vmatpush1.bf16.msra.mxu0 0
        %407 = vmatprep.subr.bf16.mxu0 0
        %408 = vmatpush1.bf16.msra.mxu0 0
        %409 = vmatprep.subr.bf16.mxu0 0
        %410 = vmatpush1.bf16.msra.mxu0 0
        %411 = vmatprep.subr.bf16.mxu0 0
        %412 = vmatpush1.bf16.msra.mxu0 0
        %413 = vmatprep.subr.bf16.mxu0 0
        %414 = vmatpush1.bf16.msra.mxu0 0
        %415 = vmatprep.subr.bf16.mxu0 0
        %416 = vmatpush1.bf16.msra.mxu0 0
        %417 = vmatprep.subr.bf16.mxu0 0
        %418 = vmatpush1.bf16.msra.mxu0 0
        %419 = vmatprep.subr.bf16.mxu0 0
        %420 = vmatpush1.bf16.msra.mxu0 0
        %421 = vmatprep.subr.bf16.mxu0 0
        %422 = vmatpush1.bf16.msra.mxu0 0
        %423 = vmatprep.subr.bf16.mxu0 0
        %424 = vmatpush1.bf16.msra.mxu0 0
        %425 = vmatprep.subr.bf16.mxu0 0
        %426 = vmatpush1.bf16.msra.mxu0 0
        %427 = vmatprep.subr.bf16.mxu0 0
        %428 = vmatpush1.bf16.msra.mxu0 0
        %429 = vmatprep.subr.bf16.mxu0 0
        %430 = vmatpush1.bf16.msra.mxu0 0
        %431 = vmatprep.subr.bf16.mxu0 0
        %432 = vmatpush1.bf16.msra.mxu0 0
        %433 = vmatprep.mubr.bf16.mxu0 0
        %434 = vmatmul.mubr.bf16.gmra.mrb[0].mxu0 %v399
        %v435 = vpop.f32.mrb[0].mxu0
        %v436 = vadd.f32 0.0, %v435
        %v437 = vpop.f32.mrb[0].mxu0
        %v438 = vpop.f32.mrb[0].mxu0
        %v439 = vpop.f32.mrb[0].mxu0
        %440 = vdwg.mxu0
        %v441 = vpack.c.bf16 %v436, %v436
        %442 = vst.msk [vmem:[%s338] sm:$0xf] %vm380, %v441
        %v444 = vunpack.c.l.b16 %v441
        %v445 = vpack.c.b16 %v444, %v444
        %446 = vrot.lane.b32.xlu0 %v445, 96
        %v447 = vpop.permute.xlu0 %446
        %449 = vst.msk [vmem:[%s345] sm:$0xf] %vm380, %v447
        %s450 = sand.u32 %s142, 1
        %s451 = scalar_lea.sflag [#allocation4], %s450
        %s452 = sand.u32 %s142, 1
        %s453 = smul.addr %s452, 4
        %s454 = scalar_lea.vmem [#allocation10], %s453
        %s455 = sand.u32 %s29, 1
        %s456 = scalar_lea.sflag [#allocation12], %s455
        %s457 = sand.u32 %s170, 1
        %s458 = smul.addr %s457, 4
        %s459 = scalar_lea.vmem [#allocation11], %s458
        %s460 = sand.u32 %s29, 1
        %s461 = scalar_lea.sflag [#allocation12], %s460
        %s462 = sand.u32 %s198, 1
        %s463 = smul.addr %s462, 4
        %s464 = scalar_lea.vmem [#allocation13], %s463
        // Predicated region
        $region53: #{tpu_custom_call.1} parent=35 // pred_check
          %p465 = pneg %p152
        $region54: #{tpu_custom_call.1} parent=35 // pred_check_branch
          %467 = sbr.rel (%p465) target = $region56
        $region55: #{tpu_custom_call.1} parent=35 // pred_region
          %s469 = ssub.s32 64, 64
          %470 = vsyncadd %s451, %s469
          %s471 = sadd.s32 %s34, %s33
          %s472 = smul.addr %s471, 64
          %s473 = scalar_lea.hbm %s4, %s472
          %s475 = sshll.u32 %s454, 4
          %s476 = int_to_ptr.vmem [resolvable:$true] %s475
          %478 = dma.vmem_to_hbm [thread:$0]  %s476, 64, %s473, %s451
        $region56: #{tpu_custom_call.1} parent=35 // pred_fallthru
          _
        // Predicated region
        $region57: #{tpu_custom_call.1} parent=35 // pred_check
          %p479 = pneg %p180
        $region58: #{tpu_custom_call.1} parent=35 // pred_check_branch
          %481 = sbr.rel (%p479) target = $region60
        $region59: #{tpu_custom_call.1} parent=35 // pred_region
          %s483 = ssub.s32 64, 64
          %484 = vsyncadd %s456, %s483
          %s485 = sadd.s32 %s34, %s33
          %s486 = smul.addr %s485, 64
          %s487 = scalar_lea.hbm %s5, %s486
          %s489 = sshll.u32 %s459, 4
          %s490 = int_to_ptr.vmem [resolvable:$true] %s489
          %492 = dma.vmem_to_hbm [thread:$0]  %s490, 64, %s487, %s456
        $region60: #{tpu_custom_call.1} parent=35 // pred_fallthru
          _
        // Predicated region
        $region61: #{tpu_custom_call.1} parent=35 // pred_check
          %p493 = pneg %p208
        $region62: #{tpu_custom_call.1} parent=35 // pred_check_branch
          %495 = sbr.rel (%p493) target = $region64
        $region63: #{tpu_custom_call.1} parent=35 // pred_region
          %s497 = ssub.s32 64, 64
          %498 = vsyncadd %s461, %s497
          %s499 = sadd.s32 %s34, %s33
          %s500 = smul.addr %s499, 64
          %s501 = scalar_lea.hbm %s6, %s500
          %s503 = sshll.u32 %s464, 4
          %s504 = int_to_ptr.vmem [resolvable:$true] %s503
          %506 = dma.vmem_to_hbm [thread:$0]  %s504, 64, %s501, %s461
        $region64: #{tpu_custom_call.1} parent=35 // pred_fallthru
          _
      $region36: #{tpu_custom_call.1} parent=5 // pred_fallthru
        _
      %p507 = scmp.le.s32.totalorder 2, %s24
      // Predicated region
      $region65: #{tpu_custom_call.1} parent=5 // pred_check
        %p508 = pneg %p507
      $region66: #{tpu_custom_call.1} parent=5 // pred_check_branch
        %510 = sbr.rel (%p508) target = $region68
      $region67: #{tpu_custom_call.1} parent=5 // pred_region
        %s511 = ssub.s32 %s24, 2
        // Predicated region
        $region69: #{tpu_custom_call.1} parent=67 // pred_check
          %p512 = pneg %p158
        $region70: #{tpu_custom_call.1} parent=67 // pred_check_branch
          %514 = sbr.rel (%p512) target = $region72
        $region71: #{tpu_custom_call.1} parent=67 // pred_region
          %s515 = sand.u32 %s143, 1
          %s516 = scalar_lea.sflag [#allocation4], %s515
          %s517 = sand.u32 %s143, 1
          %s518 = smul.addr %s517, 4
          %s519 = scalar_lea.vmem [#allocation10], %s518
          %520 = dma.done %s516, 64
        $region72: #{tpu_custom_call.1} parent=67 // pred_fallthru
          _
        // Predicated region
        $region73: #{tpu_custom_call.1} parent=67 // pred_check
          %p521 = pneg %p186
        $region74: #{tpu_custom_call.1} parent=67 // pred_check_branch
          %523 = sbr.rel (%p521) target = $region76
        $region75: #{tpu_custom_call.1} parent=67 // pred_region
          %s524 = sand.u32 %s30, 1
          %s525 = scalar_lea.sflag [#allocation12], %s524
          %s526 = sand.u32 %s171, 1
          %s527 = smul.addr %s526, 4
          %s528 = scalar_lea.vmem [#allocation11], %s527
          %529 = dma.done %s525, 64
        $region76: #{tpu_custom_call.1} parent=67 // pred_fallthru
          _
        // Predicated region
        $region77: #{tpu_custom_call.1} parent=67 // pred_check
          %p530 = pneg %p214
        $region78: #{tpu_custom_call.1} parent=67 // pred_check_branch
          %532 = sbr.rel (%p530) target = $region80
        $region79: #{tpu_custom_call.1} parent=67 // pred_region
          %s533 = sand.u32 %s30, 1
          %s534 = scalar_lea.sflag [#allocation12], %s533
          %s535 = sand.u32 %s199, 1
          %s536 = smul.addr %s535, 4
          %s537 = scalar_lea.vmem [#allocation13], %s536
          %538 = dma.done %s534, 64
        $region80: #{tpu_custom_call.1} parent=67 // pred_fallthru
          _
      $region68: #{tpu_custom_call.1} parent=5 // pred_fallthru
        _
    $region6: #{tpu_custom_call.1} parent=1 // loop_footer
      %s28 = sadd.s32 1, %s24
    $region7: #{tpu_custom_call.1} parent=1 // loop_footer_branch
      %23 = sbr.rel target = $region3
    $region8: #{tpu_custom_call.1} parent=1 // loop_exit
      _
    %539 = vsyncpa [#allocation3], 1
    %s540 = scalar_lea.sflag [#allocation3], 1
    %541 = vsyncpa %s540, 1
    %542 = vsyncpa [#allocation6], 1
    %543 = vsyncpa [#allocation9], 1
    %544 = vsyncpa [#allocation4], 1
    %s545 = scalar_lea.sflag [#allocation4], 1
    %546 = vsyncpa %s545, 1
    %547 = vsyncpa [#allocation12], 1
    %s548 = scalar_lea.sflag [#allocation12], 1
    %549 = vsyncpa %s548, 1

// kernel: tpu_custom_call.1
$region0: #{tpu_custom_call.1}
  #allocation0 [shape = 'u32[]', space=smem, size = 0x4, offset = 0x4, fixed_abs, tag = 'smem constant byte address 0x4 - core index']
  #allocation1 [shape = 'u32[144,128]{1,0:T(1,128)}', space=vmem, size = 0x12000, scoped, tag = 'internal scratch']
  %s0 = inlined_call_operand.hbm [shape: f32[2,8,32], index: 0, kind: input, shape index: {}]
  %s1 = inlined_call_operand.hbm [shape: f32[1,32], index: 1, kind: input, shape index: {}]
  %s2 = inlined_call_operand.hbm [shape: f32[1,32], index: 2, kind: input, shape index: {}]
  %s3 = inlined_call_operand.hbm [shape: bf16[32,64], index: 3, kind: input, shape index: {}]
  %s4 = inlined_call_operand.hbm [shape: bf16[2,8,32], index: 4, kind: output, shape index: {0}]
  %s5 = inlined_call_operand.hbm [shape: bf16[2,8,32], index: 5, kind: output, shape index: {1}]
  %s6 = inlined_call_operand.hbm [shape: bf16[2,8,32], index: 6, kind: output, shape index: {2}]
  %7 = xla_tuple %s4, %s5, %s6
  %s8 = sld [smem:[#allocation0]]
  $region81: #{tpu_custom_call.1} parent=0
    _
  %s10 = ssub.s32 1, %s8
  %s11 = scalar_select 0, %s10, %s8
  $region1: #{tpu_custom_call.1} parent=0
    #allocation2 [shape = 'u8[8192]{0}', space=vmem, size = 0x2000, scoped, tag = 'input window, operand 0']
    #allocation3 [shape = 's32[2]{0}', space=sflag, size = 0x8, scoped, tag = 'scoped memory for tpu_custom_call.1']
    #allocation4 [shape = 's32[2]{0}', space=sflag, size = 0x8, scoped, tag = 'scoped memory for tpu_custom_call.1']
    #allocation5 [shape = 'u8[512]{0}', space=vmem, size = 0x400, scoped, tag = 'input window, operand 1, single buffered']
    #allocation6 [shape = 's32[1]{0}', space=sflag, size = 0x4, scoped, tag = 'scoped memory for tpu_custom_call.1']
    #allocation7 [shape = 'u8[512]{0}', space=vmem, size = 0x400, scoped, tag = 'input window, operand 2, single buffered']
    #allocation8 [shape = 'u8[8192]{0}', space=vmem, size = 0x2000, scoped, tag = 'input window, operand 3, single buffered']
    #allocation9 [shape = 's32[1]{0}', space=sflag, size = 0x4, scoped, tag = 'scoped memory for tpu_custom_call.1']
    #allocation10 [shape = 'u8[4096]{0}', space=vmem, size = 0x1000, scoped, tag = 'output window, operand 0']
    #allocation11 [shape = 'u8[4096]{0}', space=vmem, size = 0x1000, scoped, tag = 'output window, operand 1']
    #allocation12 [shape = 's32[2]{0}', space=sflag, size = 0x8, scoped, tag = 'scoped memory for tpu_custom_call.1']
    #allocation13 [shape = 'u8[4096]{0}', space=vmem, size = 0x1000, scoped, tag = 'output window, operand 2']
    %12 = vsyncpa [#allocation3], 0
    %s13 = scalar_lea.sflag [#allocation3], 1
    %14 = vsyncpa %s13, 0
    %15 = vsyncpa [#allocation6], 0
    %16 = vsyncpa [#allocation9], 0
    %17 = vsyncpa [#allocation4], 0
    %s18 = scalar_lea.sflag [#allocation4], 1
    %19 = vsyncpa %s18, 0
    %20 = vsyncpa [#allocation12], 0
    %s21 = scalar_lea.sflag [#allocation12], 1
    %22 = vsyncpa %s21, 0
    loop: start=0, step=1, limit=4
    $region2: #{tpu_custom_call.1} parent=1 // loop_pre_header
      _
    $region3: #{tpu_custom_call.1} parent=1 // loop_header
      %s24 = sphi 0, %s28
      %p25 = scmp.ge.s32.totalorder %s24, 4
      %s31 = sphi 0, %s43
      %s32 = sphi 0, %s39
      %s33 = sphi 0, %s31
      %s34 = sphi 0, %s32
      %s35 = sphi 0, %s33
      %s36 = sphi 0, %s34
      %s48 = sphi 0, %s50
      %s51 = sphi 0, %s48
      %s52 = sphi 0, %s51
      %s68 = sphi 0, %s52
      %s72 = sphi 0, %s72
      %s74 = sphi 0, %s72
      %s75 = sphi 0, %s74
      %s89 = sphi 0, %s75
      %s93 = sphi 0, %s93
      %s95 = sphi 0, %s93
      %s96 = sphi 0, %s95
      %s110 = sphi 0, %s96
      %s114 = sphi 0, %s114
      %s116 = sphi 0, %s114
      %s117 = sphi 0, %s116
      %s131 = sphi 0, %s117
      %s139 = sphi 0, %s141
      %s142 = sphi 0, %s139
      %s143 = sphi 0, %s142
      %s159 = sphi 0, %s143
      %s167 = sphi 0, %s169
      %s170 = sphi 0, %s167
      %s171 = sphi 0, %s170
      %s187 = sphi 0, %s171
      %s195 = sphi 0, %s197
      %s198 = sphi 0, %s195
      %s199 = sphi 0, %s198
      %s215 = sphi 0, %s199
    $region4: #{tpu_custom_call.1} parent=1 // loop_header_branch
      %27 = sbr.rel (%p25) target = $region8
    $region5: #{tpu_custom_call.1} parent=1 // loop_body
      %s29 = ssub.s32 %s24, 1
      %s30 = ssub.s32 %s24, 2
      %s37 = sadd.s32 1, %s32
      %p38 = scmp.ge.s32.totalorder %s37, 1
      %s39 = scalar_select %p38, 0, %s37
      %s40 = sadd.s32 1, %s31
      %s41 = scalar_select %p38, %s40, %s31
      %p42 = scmp.ge.s32.totalorder %s41, 2
      %s43 = scalar_select %p42, 0, %s41
      %s44 = ssub.s32 %s31, %s43
      %s45 = ssub.s32 %s32, %s39
      %s46 = sor.u32 %s44, %s45
      %p47 = scmp.eq.s32.totalorder %s46, 0
      %s49 = sadd.s32 %s48, 1
      %s50 = scalar_select %p47, %s48, %s49
      %p53 = pneg %p47
      %p54 = scmp.eq.s32.totalorder %s24, 1
      %p55 = por %p53, %p54
      %p56 = scmp.ne.s32.totalorder %s48, %s51
      %p57 = scmp.eq.s32.totalorder %s24, 0
      %p58 = por %p56, %p57
      %p59 = scmp.ne.s32.totalorder %s48, %s51
      %p60 = scmp.eq.s32.totalorder %s29, 1
      %p61 = por %p59, %p60
      %p62 = scmp.ne.s32.totalorder %s51, %s52
      %p63 = scmp.eq.s32.totalorder %s29, 0
      %p64 = por %p62, %p63
      %p65 = scmp.ne.s32.totalorder %s51, %s52
      %p66 = scmp.eq.s32.totalorder %s30, 1
      %p67 = por %p65, %p66
      %p69 = scmp.ne.s32.totalorder %s52, %s68
      %p70 = scmp.eq.s32.totalorder %s30, 0
      %p71 = por %p69, %p70
      %s73 = sadd.s32 %s72, 1
      %p76 = scmp.eq.s32.totalorder %s24, 1
      %p77 = scmp.ne.s32.totalorder %s72, %s74
      %p78 = scmp.eq.s32.totalorder %s24, 0
      %p79 = por %p77, %p78
      %p80 = scmp.ne.s32.totalorder %s72, %s74
      %p81 = scmp.eq.s32.totalorder %s29, 1
      %p82 = por %p80, %p81
      %p83 = scmp.ne.s32.totalorder %s74, %s75
      %p84 = scmp.eq.s32.totalorder %s29, 0
      %p85 = por %p83, %p84
      %p86 = scmp.ne.s32.totalorder %s74, %s75
      %p87 = scmp.eq.s32.totalorder %s30, 1
      %p88 = por %p86, %p87
      %p90 = scmp.ne.s32.totalorder %s75, %s89
      %p91 = scmp.eq.s32.totalorder %s30, 0
      %p92 = por %p90, %p91
      %s94 = sadd.s32 %s93, 1
      %p97 = scmp.eq.s32.totalorder %s24, 1
      %p98 = scmp.ne.s32.totalorder %s93, %s95
      %p99 = scmp.eq.s32.totalorder %s24, 0
      %p100 = por %p98, %p99
      %p101 = scmp.ne.s32.totalorder %s93, %s95
      %p102 = scmp.eq.s32.totalorder %s29, 1
      %p103 = por %p101, %p102
      %p104 = scmp.ne.s32.totalorder %s95, %s96
      %p105 = scmp.eq.s32.totalorder %s29, 0
      %p106 = por %p104, %p105
      %p107 = scmp.ne.s32.totalorder %s95, %s96
      %p108 = scmp.eq.s32.totalorder %s30, 1
      %p109 = por %p107, %p108
      %p111 = scmp.ne.s32.totalorder %s96, %s110
      %p112 = scmp.eq.s32.totalorder %s30, 0
      %p113 = por %p111, %p112
      %s115 = sadd.s32 %s114, 1
      %p118 = scmp.eq.s32.totalorder %s24, 1
      %p119 = scmp.ne.s32.totalorder %s114, %s116
      %p120 = scmp.eq.s32.totalorder %s24, 0
      %p121 = por %p119, %p120
      %p122 = scmp.ne.s32.totalorder %s114, %s116
      %p123 = scmp.eq.s32.totalorder %s29, 1
      %p124 = por %p122, %p123
      %p125 = scmp.ne.s32.totalorder %s116, %s117
      %p126 = scmp.eq.s32.totalorder %s29, 0
      %p127 = por %p125, %p126
      %p128 = scmp.ne.s32.totalorder %s116, %s117
      %p129 = scmp.eq.s32.totalorder %s30, 1
      %p130 = por %p128, %p129
      %p132 = scmp.ne.s32.totalorder %s117, %s131
      %p133 = scmp.eq.s32.totalorder %s30, 0
      %p134 = por %p132, %p133
      %s135 = ssub.s32 %s31, %s43
      %s136 = ssub.s32 %s32, %s39
      %s137 = sor.u32 %s135, %s136
      %p138 = scmp.eq.s32.totalorder %s137, 0
      %s140 = sadd.s32 %s139, 1
      %s141 = scalar_select %p138, %s139, %s140
      %p144 = pneg %p138
      %p145 = scmp.eq.s32.totalorder %s24, 1
      %p146 = por %p144, %p145
      %p147 = scmp.ne.s32.totalorder %s139, %s142
      %p148 = scmp.eq.s32.totalorder %s24, 0
      %p149 = por %p147, %p148
      %p150 = scmp.ne.s32.totalorder %s139, %s142
      %p151 = scmp.eq.s32.totalorder %s29, 1
      %p152 = por %p150, %p151
      %p153 = scmp.ne.s32.totalorder %s142, %s143
      %p154 = scmp.eq.s32.totalorder %s29, 0
      %p155 = por %p153, %p154
      %p156 = scmp.ne.s32.totalorder %s142, %s143
      %p157 = scmp.eq.s32.totalorder %s30, 1
      %p158 = por %p156, %p157
      %p160 = scmp.ne.s32.totalorder %s143, %s159
      %p161 = scmp.eq.s32.totalorder %s30, 0
      %p162 = por %p160, %p161
      %s163 = ssub.s32 %s31, %s43
      %s164 = ssub.s32 %s32, %s39
      %s165 = sor.u32 %s163, %s164
      %p166 = scmp.eq.s32.totalorder %s165, 0
      %s168 = sadd.s32 %s167, 1
      %s169 = scalar_select %p166, %s167, %s168
      %p172 = pneg %p166
      %p173 = scmp.eq.s32.totalorder %s24, 1
      %p174 = por %p172, %p173
      %p175 = scmp.ne.s32.totalorder %s167, %s170
      %p176 = scmp.eq.s32.totalorder %s24, 0
      %p177 = por %p175, %p176
      %p178 = scmp.ne.s32.totalorder %s167, %s170
      %p179 = scmp.eq.s32.totalorder %s29, 1
      %p180 = por %p178, %p179
      %p181 = scmp.ne.s32.totalorder %s170, %s171
      %p182 = scmp.eq.s32.totalorder %s29, 0
      %p183 = por %p181, %p182
      %p184 = scmp.ne.s32.totalorder %s170, %s171
      %p185 = scmp.eq.s32.totalorder %s30, 1
      %p186 = por %p184, %p185
      %p188 = scmp.ne.s32.totalorder %s171, %s187
      %p189 = scmp.eq.s32.totalorder %s30, 0
      %p190 = por %p188, %p189
      %s191 = ssub.s32 %s31, %s43
      %s192 = ssub.s32 %s32, %s39
      %s193 = sor.u32 %s191, %s192
      %p194 = scmp.eq.s32.totalorder %s193, 0
      %s196 = sadd.s32 %s195, 1
      %s197 = scalar_select %p194, %s195, %s196
      %p200 = pneg %p194
      %p201 = scmp.eq.s32.totalorder %s24, 1
      %p202 = por %p200, %p201
      %p203 = scmp.ne.s32.totalorder %s195, %s198
      %p204 = scmp.eq.s32.totalorder %s24, 0
      %p205 = por %p203, %p204
      %p206 = scmp.ne.s32.totalorder %s195, %s198
      %p207 = scmp.eq.s32.totalorder %s29, 1
      %p208 = por %p206, %p207
      %p209 = scmp.ne.s32.totalorder %s198, %s199
      %p210 = scmp.eq.s32.totalorder %s29, 0
      %p211 = por %p209, %p210
      %p212 = scmp.ne.s32.totalorder %s198, %s199
      %p213 = scmp.eq.s32.totalorder %s30, 1
      %p214 = por %p212, %p213
      %p216 = scmp.ne.s32.totalorder %s199, %s215
      %p217 = scmp.eq.s32.totalorder %s30, 0
      %p218 = por %p216, %p217
      %p219 = scmp.le.s32.totalorder 1, %s24
      %p220 = scmp.lt.s32.totalorder %s24, 3
      %p221 = pnand %p219, %p220
      %p222 = pneg %p221
      // Predicated region
      $region9: #{tpu_custom_call.1} parent=5 // pred_check
        _
      $region10: #{tpu_custom_call.1} parent=5 // pred_check_branch
        %224 = sbr.rel (%p221) target = $region12
      $region11: #{tpu_custom_call.1} parent=5 // pred_region
        %s225 = ssub.s32 %s24, 1
        // Predicated region
        $region13: #{tpu_custom_call.1} parent=11 // pred_check
          %p226 = pneg %p85
        $region14: #{tpu_custom_call.1} parent=11 // pred_check_branch
          %228 = sbr.rel (%p226) target = $region16
        $region15: #{tpu_custom_call.1} parent=11 // pred_region
          %s230 = ssub.s32 16, 16
          %231 = vsyncadd [#allocation6], %s230
          %s233 = sshll.u32 [#allocation5], 4
          %s234 = int_to_ptr.vmem [resolvable:$true] %s233
          %236 = dma.hbm_to_vmem [thread:$0]  %s1, 16, %s234, [#allocation6]
        $region16: #{tpu_custom_call.1} parent=11 // pred_fallthru
          _
        // Predicated region
        $region17: #{tpu_custom_call.1} parent=11 // pred_check
          %p237 = pneg %p106
        $region18: #{tpu_custom_call.1} parent=11 // pred_check_branch
          %239 = sbr.rel (%p237) target = $region20
        $region19: #{tpu_custom_call.1} parent=11 // pred_region
          %s241 = ssub.s32 16, 16
          %242 = vsyncadd [#allocation6], %s241
          %s244 = sshll.u32 [#allocation7], 4
          %s245 = int_to_ptr.vmem [resolvable:$true] %s244
          %247 = dma.hbm_to_vmem [thread:$0]  %s2, 16, %s245, [#allocation6]
        $region20: #{tpu_custom_call.1} parent=11 // pred_fallthru
          _
        // Predicated region
        $region21: #{tpu_custom_call.1} parent=11 // pred_check
          %p248 = pneg %p127
        $region22: #{tpu_custom_call.1} parent=11 // pred_check_branch
          %250 = sbr.rel (%p248) target = $region24
        $region23: #{tpu_custom_call.1} parent=11 // pred_region
          %s252 = ssub.s32 256, 256
          %253 = vsyncadd [#allocation9], %s252
          %s254 = sshll.u32 [#allocation8], 4
          %s255 = int_to_ptr.vmem [resolvable:$true] %s254
          %260 = dma.hbm_to_vmem [thread:$0]  %s3, 256, %s255, [#allocation9], 64, 64, 4
        $region24: #{tpu_custom_call.1} parent=11 // pred_fallthru
          _
      $region12: #{tpu_custom_call.1} parent=5 // pred_fallthru
        _
      %p261 = scmp.lt.s32.totalorder %s24, 2
      // Predicated region
      $region25: #{tpu_custom_call.1} parent=5 // pred_check
        %p262 = pneg %p261
      $region26: #{tpu_custom_call.1} parent=5 // pred_check_branch
        %264 = sbr.rel (%p262) target = $region28
      $region27: #{tpu_custom_call.1} parent=5 // pred_region
        // Predicated region
        $region29: #{tpu_custom_call.1} parent=27 // pred_check
          %p265 = pneg %p58
        $region30: #{tpu_custom_call.1} parent=27 // pred_check_branch
          %267 = sbr.rel (%p265) target = $region32
        $region31: #{tpu_custom_call.1} parent=27 // pred_region
          %s268 = sand.u32 %s48, 1
          %s269 = scalar_lea.sflag [#allocation3], %s268
          %s270 = sand.u32 %s48, 1
          %s271 = smul.addr %s270, 8
          %s272 = scalar_lea.vmem [#allocation2], %s271
          %s274 = ssub.s32 128, 128
          %275 = vsyncadd %s269, %s274
          %s276 = sadd.s32 %s32, %s31
          %s277 = smul.addr %s276, 128
          %s278 = scalar_lea.hbm %s0, %s277
          %s280 = sshll.u32 %s272, 4
          %s281 = int_to_ptr.vmem [resolvable:$true] %s280
          %283 = dma.hbm_to_vmem [thread:$0]  %s278, 128, %s281, %s269
        $region32: #{tpu_custom_call.1} parent=27 // pred_fallthru
          _
      $region28: #{tpu_custom_call.1} parent=5 // pred_fallthru
        _
      %p284 = scmp.le.s32.totalorder 1, %s24
      %p285 = scmp.lt.s32.totalorder %s24, 3
      %p286 = pnand %p284, %p285
      %p287 = pneg %p286
      // Predicated region
      $region33: #{tpu_custom_call.1} parent=5 // pred_check
        _
      $region34: #{tpu_custom_call.1} parent=5 // pred_check_branch
        %289 = sbr.rel (%p286) target = $region36
      $region35: #{tpu_custom_call.1} parent=5 // pred_region
        %s290 = ssub.s32 %s24, 1
        %s291 = sand.u32 %s51, 1
        %s292 = scalar_lea.sflag [#allocation3], %s291
        %s293 = sand.u32 %s51, 1
        %s294 = smul.addr %s293, 8
        %s295 = scalar_lea.vmem [#allocation2], %s294
        // Predicated region
        $region37: #{tpu_custom_call.1} parent=35 // pred_check
          %p296 = pneg %p64
        $region38: #{tpu_custom_call.1} parent=35 // pred_check_branch
          %298 = sbr.rel (%p296) target = $region40
        $region39: #{tpu_custom_call.1} parent=35 // pred_region
          %299 = dma.done %s292, 128
        $region40: #{tpu_custom_call.1} parent=35 // pred_fallthru
          _
        // Predicated region
        $region41: #{tpu_custom_call.1} parent=35 // pred_check
          %p300 = pneg %p85
        $region42: #{tpu_custom_call.1} parent=35 // pred_check_branch
          %302 = sbr.rel (%p300) target = $region44
        $region43: #{tpu_custom_call.1} parent=35 // pred_region
          %303 = dma.done [#allocation6], 16
        $region44: #{tpu_custom_call.1} parent=35 // pred_fallthru
          _
        // Predicated region
        $region45: #{tpu_custom_call.1} parent=35 // pred_check
          %p304 = pneg %p106
        $region46: #{tpu_custom_call.1} parent=35 // pred_check_branch
          %306 = sbr.rel (%p304) target = $region48
        $region47: #{tpu_custom_call.1} parent=35 // pred_region
          %307 = dma.done [#allocation6], 16
        $region48: #{tpu_custom_call.1} parent=35 // pred_fallthru
          _
        // Predicated region
        $region49: #{tpu_custom_call.1} parent=35 // pred_check
          %p308 = pneg %p127
        $region50: #{tpu_custom_call.1} parent=35 // pred_check_branch
          %310 = sbr.rel (%p308) target = $region52
        $region51: #{tpu_custom_call.1} parent=35 // pred_region
          %311 = dma.done [#allocation9], 256
        $region52: #{tpu_custom_call.1} parent=35 // pred_fallthru
          _
        %s312 = sand.u32 %s51, 1
        %s313 = scalar_lea.sflag [#allocation3], %s312
        %s314 = sand.u32 %s51, 1
        %s315 = smul.addr %s314, 8
        %s316 = scalar_lea.vmem [#allocation2], %s315
        %p317 = pneg %p64
        %p318 = pneg %p61
        %p319 = pneg %p85
        %p320 = pneg %p82
        %p321 = pneg %p106
        %p322 = pneg %p103
        %p323 = pneg %p127
        %p324 = pneg %p124
        %p325 = pneg %p155
        %p326 = pneg %p152
        %s327 = sand.u32 %s142, 1
        %s328 = scalar_lea.sflag [#allocation4], %s327
        %s329 = sand.u32 %s142, 1
        %s330 = smul.addr %s329, 4
        %s331 = scalar_lea.vmem [#allocation10], %s330
        %p332 = pneg %p183
        %p333 = pneg %p180
        %s334 = sand.u32 %s29, 1
        %s335 = scalar_lea.sflag [#allocation12], %s334
        %s336 = sand.u32 %s170, 1
        %s337 = smul.addr %s336, 4
        %s338 = scalar_lea.vmem [#allocation11], %s337
        %p339 = pneg %p211
        %p340 = pneg %p208
        %s341 = sand.u32 %s29, 1
        %s342 = scalar_lea.sflag [#allocation12], %s341
        %s343 = sand.u32 %s198, 1
        %s344 = smul.addr %s343, 4
        %s345 = scalar_lea.vmem [#allocation13], %s344
        %v347 = vld [vmem:[%s295] sm:$0xff]
        %vm348 = vcmask 261120
        %v349 = vsel %vm348, %v347, 0.0
        %350 = vadd.xlane.f32.xlu0 %v349
        %v351 = vpop.xlane.xlu0 %350
        %v352 = vrcp.pop 32.0
        %v353 = vmul.f32 %v351, %v352
        %v354 = vsub.f32 %v347, %v353
        %v355 = vmul.f32 %v354, %v354
        %v356 = vsel %vm348, %v355, 0.0
        %357 = vadd.xlane.f32.xlu0 %v356
        %v358 = vpop.xlane.xlu0 %357
        %v359 = vmul.f32 %v358, %v352
        %v360 = vadd.f32 %v359, 1e-12
        %v361 = vrsqrt.pop %v360
        %v362 = vmul.f32 %v354, %v361
        %v363 = vld [vmem:[#allocation5] sm:$0x1]
        %v365 = vlaneseq
        %v366 = vshrl.u32 %v365, 7
        %v367 = vsub.s32 0, %v366
        %v368 = vrot.slane %v363, %v367
        %v370 = vmul.f32 %v362, %v368
        %v371 = vld [vmem:[#allocation7] sm:$0x1]
        %v373 = vlaneseq
        %v374 = vshrl.u32 %v373, 7
        %v375 = vsub.s32 0, %v374
        %v376 = vrot.slane %v371, %v375
        %v378 = vadd.f32 %v370, %v376
        %v379 = vpack.c.bf16 %v378, %v378
        %vm380 = vcmask 257024
        %381 = vst.msk [vmem:[%s331] sm:$0xf] %vm380, %v379
        %v382 = vld [vmem:[#allocation8] sm:$0xf]
        %v383 = vld [vmem:[#allocation8 + $0x4] sm:$0xf]
        %v384 = vld [vmem:[#allocation8 + $0x8] sm:$0xf]
        %v385 = vld [vmem:[#allocation8 + $0xc] sm:$0xf]
        %v390 = vunpack.c.l.b16 %v382
        %v391 = vunpack.c.l.b16 %v383
        %v392 = vunpack.c.l.b16 %v384
        %v393 = vunpack.c.l.b16 %v385
        %v394 = vpack.c.b16 %v391, %v390
        %v395 = vpack.c.b16 %v393, %v392
        %v399 = vsel %vm348, %v379, 0
        %401 = vmatprep.subr.bf16.mxu0 0
        %402 = vmatpush1.bf16.msra.mxu0 %v394
        %403 = vmatprep.subr.bf16.mxu0 0
        %404 = vmatpush1.bf16.msra.mxu0 %v395
        %405 = vmatprep.subr.bf16.mxu0 0
        %406 = vmatpush1.bf16.msra.mxu0 0
        %407 = vmatprep.subr.bf16.mxu0 0
        %408 = vmatpush1.bf16.msra.mxu0 0
        %409 = vmatprep.subr.bf16.mxu0 0
        %410 = vmatpush1.bf16.msra.mxu0 0
        %411 = vmatprep.subr.bf16.mxu0 0
        %412 = vmatpush1.bf16.msra.mxu0 0
        %413 = vmatprep.subr.bf16.mxu0 0
        %414 = vmatpush1.bf16.msra.mxu0 0
        %415 = vmatprep.subr.bf16.mxu0 0
        %416 = vmatpush1.bf16.msra.mxu0 0
        %417 = vmatprep.subr.bf16.mxu0 0
        %418 = vmatpush1.bf16.msra.mxu0 0
        %419 = vmatprep.subr.bf16.mxu0 0
        %420 = vmatpush1.bf16.msra.mxu0 0
        %421 = vmatprep.subr.bf16.mxu0 0
        %422 = vmatpush1.bf16.msra.mxu0 0
        %423 = vmatprep.subr.bf16.mxu0 0
        %424 = vmatpush1.bf16.msra.mxu0 0
        %425 = vmatprep.subr.bf16.mxu0 0
        %426 = vmatpush1.bf16.msra.mxu0 0
        %427 = vmatprep.subr.bf16.mxu0 0
        %428 = vmatpush1.bf16.msra.mxu0 0
        %429 = vmatprep.subr.bf16.mxu0 0
        %430 = vmatpush1.bf16.msra.mxu0 0
        %431 = vmatprep.subr.bf16.mxu0 0
        %432 = vmatpush1.bf16.msra.mxu0 0
        %433 = vmatprep.mubr.bf16.mxu0 0
        %434 = vmatmul.mubr.bf16.gmra.mrb[0].mxu0 %v399
        %v435 = vpop.f32.mrb[0].mxu0
        %v436 = vadd.f32 0.0, %v435
        %v437 = vpop.f32.mrb[0].mxu0
        %v438 = vpop.f32.mrb[0].mxu0
        %v439 = vpop.f32.mrb[0].mxu0
        %440 = vdwg.mxu0
        %v441 = vpack.c.bf16 %v436, %v436
        %442 = vst.msk [vmem:[%s338] sm:$0xf] %vm380, %v441
        %v444 = vunpack.c.l.b16 %v441
        %v445 = vpack.c.b16 %v444, %v444
        %446 = vrot.lane.b32.xlu0 %v445, 96
        %v447 = vpop.permute.xlu0 %446
        %449 = vst.msk [vmem:[%s345] sm:$0xf] %vm380, %v447
        %s450 = sand.u32 %s142, 1
        %s451 = scalar_lea.sflag [#allocation4], %s450
        %s452 = sand.u32 %s142, 1
        %s453 = smul.addr %s452, 4
        %s454 = scalar_lea.vmem [#allocation10], %s453
        %s455 = sand.u32 %s29, 1
        %s456 = scalar_lea.sflag [#allocation12], %s455
        %s457 = sand.u32 %s170, 1
        %s458 = smul.addr %s457, 4
        %s459 = scalar_lea.vmem [#allocation11], %s458
        %s460 = sand.u32 %s29, 1
        %s461 = scalar_lea.sflag [#allocation12], %s460
        %s462 = sand.u32 %s198, 1
        %s463 = smul.addr %s462, 4
        %s464 = scalar_lea.vmem [#allocation13], %s463
        // Predicated region
        $region53: #{tpu_custom_call.1} parent=35 // pred_check
          %p465 = pneg %p152
        $region54: #{tpu_custom_call.1} parent=35 // pred_check_branch
          %467 = sbr.rel (%p465) target = $region56
        $region55: #{tpu_custom_call.1} parent=35 // pred_region
          %s469 = ssub.s32 64, 64
          %470 = vsyncadd %s451, %s469
          %s471 = sadd.s32 %s34, %s33
          %s472 = smul.addr %s471, 64
          %s473 = scalar_lea.hbm %s4, %s472
          %s475 = sshll.u32 %s454, 4
          %s476 = int_to_ptr.vmem [resolvable:$true] %s475
          %478 = dma.vmem_to_hbm [thread:$0]  %s476, 64, %s473, %s451
        $region56: #{tpu_custom_call.1} parent=35 // pred_fallthru
          _
        // Predicated region
        $region57: #{tpu_custom_call.1} parent=35 // pred_check
          %p479 = pneg %p180
        $region58: #{tpu_custom_call.1} parent=35 // pred_check_branch
          %481 = sbr.rel (%p479) target = $region60
        $region59: #{tpu_custom_call.1} parent=35 // pred_region
          %s483 = ssub.s32 64, 64
          %484 = vsyncadd %s456, %s483
          %s485 = sadd.s32 %s34, %s33
          %s486 = smul.addr %s485, 64
          %s487 = scalar_lea.hbm %s5, %s486
          %s489 = sshll.u32 %s459, 4
          %s490 = int_to_ptr.vmem [resolvable:$true] %s489
          %492 = dma.vmem_to_hbm [thread:$0]  %s490, 64, %s487, %s456
        $region60: #{tpu_custom_call.1} parent=35 // pred_fallthru
          _
        // Predicated region
        $region61: #{tpu_custom_call.1} parent=35 // pred_check
          %p493 = pneg %p208
        $region62: #{tpu_custom_call.1} parent=35 // pred_check_branch
          %495 = sbr.rel (%p493) target = $region64
        $region63: #{tpu_custom_call.1} parent=35 // pred_region
          %s497 = ssub.s32 64, 64
          %498 = vsyncadd %s461, %s497
          %s499 = sadd.s32 %s34, %s33
          %s500 = smul.addr %s499, 64
          %s501 = scalar_lea.hbm %s6, %s500
          %s503 = sshll.u32 %s464, 4
          %s504 = int_to_ptr.vmem [resolvable:$true] %s503
          %506 = dma.vmem_to_hbm [thread:$0]  %s504, 64, %s501, %s461
        $region64: #{tpu_custom_call.1} parent=35 // pred_fallthru
          _
      $region36: #{tpu_custom_call.1} parent=5 // pred_fallthru
        _
      %p507 = scmp.le.s32.totalorder 2, %s24
      // Predicated region
      $region65: #{tpu_custom_call.1} parent=5 // pred_check
        %p508 = pneg %p507
      $region66: #{tpu_custom_call.1} parent=5 // pred_check_branch
        %510 = sbr.rel (%p508) target = $region68
      $region67: #{tpu_custom_call.1} parent=5 // pred_region
        %s511 = ssub.s32 %s24, 2
        // Predicated region
        $region69: #{tpu_custom_call.1} parent=67 // pred_check
          %p512 = pneg %p158
        $region70: #{tpu_custom_call.1} parent=67 // pred_check_branch
          %514 = sbr.rel (%p512) target = $region72
        $region71: #{tpu_custom_call.1} parent=67 // pred_region
          %s515 = sand.u32 %s143, 1
          %s516 = scalar_lea.sflag [#allocation4], %s515
          %s517 = sand.u32 %s143, 1
          %s518 = smul.addr %s517, 4
          %s519 = scalar_lea.vmem [#allocation10], %s518
          %520 = dma.done %s516, 64
        $region72: #{tpu_custom_call.1} parent=67 // pred_fallthru
          _
        // Predicated region
        $region73: #{tpu_custom_call.1} parent=67 // pred_check
          %p521 = pneg %p186
        $region74: #{tpu_custom_call.1} parent=67 // pred_check_branch
          %523 = sbr.rel (%p521) target = $region76
        $region75: #{tpu_custom_call.1} parent=67 // pred_region
          %s524 = sand.u32 %s30, 1
          %s525 = scalar_lea.sflag [#allocation12], %s524
          %s526 = sand.u32 %s171, 1
          %s527 = smul.addr %s526, 4
          %s528 = scalar_lea.vmem [#allocation11], %s527
          %529 = dma.done %s525, 64
        $region76: #{tpu_custom_call.1} parent=67 // pred_fallthru
          _
        // Predicated region
        $region77: #{tpu_custom_call.1} parent=67 // pred_check
          %p530 = pneg %p214
        $region78: #{tpu_custom_call.1} parent=67 // pred_check_branch
          %532 = sbr.rel (%p530) target = $region80
        $region79: #{tpu_custom_call.1} parent=67 // pred_region
          %s533 = sand.u32 %s30, 1
          %s534 = scalar_lea.sflag [#allocation12], %s533
          %s535 = sand.u32 %s199, 1
          %s536 = smul.addr %s535, 4
          %s537 = scalar_lea.vmem [#allocation13], %s536
          %538 = dma.done %s534, 64
        $region80: #{tpu_custom_call.1} parent=67 // pred_fallthru
          _
      $region68: #{tpu_custom_call.1} parent=5 // pred_fallthru
        _
    $region6: #{tpu_custom_call.1} parent=1 // loop_footer
      %s28 = sadd.s32 1, %s24
    $region7: #{tpu_custom_call.1} parent=1 // loop_footer_branch
      %23 = sbr.rel target = $region3
    $region8: #{tpu_custom_call.1} parent=1 // loop_exit
      _
    %539 = vsyncpa [#allocation3], 1
    %s540 = scalar_lea.sflag [#allocation3], 1
    %541 = vsyncpa %s540, 1
    %542 = vsyncpa [#allocation6], 1
    %543 = vsyncpa [#allocation9], 1
    %544 = vsyncpa [#allocation4], 1
    %s545 = scalar_lea.sflag [#allocation4], 1
    %546 = vsyncpa %s545, 1
    %547 = vsyncpa [#allocation12], 1
    %s548 = scalar_lea.sflag [#allocation12], 1
    %549 = vsyncpa %s548, 1

</llo_original>
